<compile_context>
chip_gen: v7x
topology: tpu7x:2x2x1
jax: 0.10.0
libtpu: 0.0.40
codegen_flags: <defaults>
</compile_context>

<pallas_src>
import math
from functools import partial

import jax
import jax.numpy as jnp
from jax.experimental import pallas as pl
from jax.experimental.pallas import tpu as pltpu

D_MODEL = 32
D_FF = 64
HEADS = 4
EPS = 1e-5  # PyTorch LayerNorm default eps


def _residual_layer_norm(y, res, gamma, beta):
    """Fused residual add + LayerNorm (biased variance, like torch)."""
    h = y + res
    mu = jnp.mean(h, axis=-1, keepdims=True)
    c = h - mu
    var = jnp.mean(c * c, axis=-1, keepdims=True)
    return c * jax.lax.rsqrt(var + EPS) * gamma + beta


def encoder_layer_kernel(x_ref, mats_ref, vecs_ref, o_ref,
                         *, batch, seq, heads, d_model, d_ff):
    f32 = jnp.float32
    dh = d_model // heads
    rows = batch * seq          # rows in this block, batch-major then seq

    x = x_ref[...].astype(f32)  # (rows, D)

    # ---- unpack the two weight slabs with static slices (free) --------------
    r0 = heads * d_model
    w_qkv = mats_ref[0:r0, 0:3 * dh].reshape(heads, d_model, 3 * dh)   # head-major QKV
    wo_h = mats_ref[r0:r0 + d_model, 0:d_model].reshape(heads, dh, d_model)
    w1 = mats_ref[r0 + d_model:r0 + 2 * d_model, 0:d_ff]
    w2 = mats_ref[r0 + 2 * d_model:r0 + 2 * d_model + d_ff, 0:d_model]

    nb = heads * rows
    # QKV bias pre-replicated over rows host-side -> plain same-shape add, no
    # middle-unit-dim broadcast/relayout inside the kernel.
    b_qkv = vecs_ref[0:nb, 0:3 * dh].reshape(heads, rows, 3 * dh)
    bo = vecs_ref[nb + 0:nb + 1, 0:d_model]
    g1 = vecs_ref[nb + 1:nb + 2, 0:d_model]
    be1 = vecs_ref[nb + 2:nb + 3, 0:d_model]
    bf1 = vecs_ref[nb + 3:nb + 4, 0:d_ff]
    bf2 = vecs_ref[nb + 4:nb + 5, 0:d_model]
    g2 = vecs_ref[nb + 5:nb + 6, 0:d_model]
    be2 = vecs_ref[nb + 6:nb + 7, 0:d_model]

    # ---- head-batched fused QKV projection: Q/K/V come out head-major -------
    # (1/sqrt(Dh) score scale is pre-folded into the Q part of w_qkv/b_qkv.)
    x_h = jnp.broadcast_to(x, (heads, rows, d_model))                  # (H, R, D)
    qkv = jnp.einsum('hrd,hde->hre', x_h, w_qkv,
                     preferred_element_type=f32) + b_qkv               # (H, R, 3Dh)

    # pure major-dim regroup: (H, B*S, 3Dh) -> (H*B, S, 3Dh)
    qkv = qkv.reshape(heads * batch, seq, 3 * dh)
    q = qkv[:, :, 0:dh]
    k = qkv[:, :, dh:2 * dh]
    v = qkv[:, :, 2 * dh:3 * dh]

    # ---- attention: single-batch-dim batched matmuls (flash-style pattern) --
    s = jnp.einsum('nqd,nkd->nqk', q, k, preferred_element_type=f32)   # (HB, S, S)
    s = s - jnp.max(s, axis=-1, keepdims=True)
    p = jnp.exp(s)
    p = p * pl.reciprocal(jnp.sum(p, axis=-1, keepdims=True), approx=True)
    o = jnp.einsum('nqk,nkd->nqd', p, v, preferred_element_type=f32)   # (HB, S, Dh)

    # ---- head-batched out-projection, summed over heads (no lane concat) ----
    o = o.reshape(heads, rows, dh)                                     # (H, R, Dh)
    attn_h = jnp.einsum('hrd,hdm->hrm', o, wo_h,
                        preferred_element_type=f32)                    # (H, R, D)
    attn = bo
    for h in range(heads):
        attn = attn + attn_h[h]

    # ---- residual + LayerNorm (self-attention), fused ----
    h1 = _residual_layer_norm(attn, x, g1, be1)

    # ---- FFN: Linear -> ReLU -> Linear (eval-mode dropout = identity) ----
    f = jnp.maximum(jnp.dot(h1, w1, preferred_element_type=f32) + bf1, 0.0)
    f = jnp.dot(f, w2, preferred_element_type=f32) + bf2

    # ---- residual + LayerNorm (FFN), fused ----
    out = _residual_layer_norm(f, h1, g2, be2)
    o_ref[...] = out.astype(o_ref.dtype)


def init_params(key, d_model=D_MODEL, d_ff=D_FF):
    ks = jax.random.split(key, 8)
    sc = 0.05
    p = {
        # attention in-projections (already in `x @ W` orientation)
        "wq": jax.random.normal(ks[0], (d_model, d_model), jnp.float32) * sc,
        "wk": jax.random.normal(ks[1], (d_model, d_model), jnp.float32) * sc,
        "wv": jax.random.normal(ks[2], (d_model, d_model), jnp.float32) * sc,
        "bq": jax.random.normal(ks[3], (1, d_model), jnp.float32) * sc,
        "bk": jax.random.normal(ks[4], (1, d_model), jnp.float32) * sc,
        "bv": jax.random.normal(ks[5], (1, d_model), jnp.float32) * sc,
        # attention out projection
        "wo": jax.random.normal(ks[6], (d_model, d_model), jnp.float32) * sc,
        "bo": jnp.zeros((1, d_model), jnp.float32),
        # layer norm after attention
        "g1": jnp.ones((1, d_model), jnp.float32),
        "be1": jnp.zeros((1, d_model), jnp.float32),
        # FFN
        "w1": jax.random.normal(ks[7], (d_model, d_ff), jnp.float32) * sc,
        "bf1": jnp.full((1, d_ff), 0.01, jnp.float32),
        "w2": jax.random.normal(jax.random.PRNGKey(42), (d_ff, d_model), jnp.float32) * sc,
        "bf2": jnp.full((1, d_model), -0.01, jnp.float32),
        # layer norm after FFN
        "g2": jnp.ones((1, d_model), jnp.float32),
        "be2": jnp.zeros((1, d_model), jnp.float32),
    }
    return p


def _pad_cols(m, cols):
    return jnp.pad(m, ((0, 0), (0, cols - m.shape[1])))


def _pad_rows_to_8(m):
    r = m.shape[0]
    pad = (-r) % 8
    return jnp.pad(m, ((0, pad), (0, 0))) if pad else m


def transformer_encoder_layer(x, params, batch_block=None):
    """x: (B, S, D), batch-first.  The whole batch is processed in one coarse
    grid step by default; only split (batch_block=B//2, 'parallel') on v7x when
    each TensorCore gets >=128 lane-aligned rows of work."""
    B, S, D = x.shape
    H = HEADS
    Dh = D // H
    d_ff = params["w1"].shape[1]
    if batch_block is None:
        batch_block = B
    assert B % batch_block == 0
    n_blocks = B // batch_block
    rows = batch_block * S

    # ---- host-side weight prep -------------------------------------------
    scale = 1.0 / math.sqrt(Dh)
    wq = params["wq"] * scale
    # Head-major fused QKV weight stack, stacked over heads along rows:
    # rows [h*D:(h+1)*D] = [Wq_h | Wk_h | Wv_h]  -> (H*D, 3*Dh)
    w_qkv = jnp.concatenate([
        jnp.concatenate([wq[:, h * Dh:(h + 1) * Dh],
                         params["wk"][:, h * Dh:(h + 1) * Dh],
                         params["wv"][:, h * Dh:(h + 1) * Dh]], axis=1)
        for h in range(H)], axis=0)
    # Per-head fused QKV bias (1/sqrt(Dh) folded into Q), replicated over the
    # per-block row count so the in-kernel add is a same-shape add: (H*rows, 3*Dh)
    b_qkv = jnp.concatenate([
        jnp.concatenate([params["bq"][:, h * Dh:(h + 1) * Dh] * scale,
                         params["bk"][:, h * Dh:(h + 1) * Dh],
                         params["bv"][:, h * Dh:(h + 1) * Dh]], axis=1)
        for h in range(H)], axis=0)                      # (H, 3*Dh)
    b_qkv_rep = jnp.repeat(b_qkv, rows, axis=0)          # (H*rows, 3*Dh)

    wcol = max(3 * Dh, D, d_ff)

    # Slab 1: all matrices (row offsets are static kernel constants).
    mats = _pad_rows_to_8(jnp.concatenate([
        _pad_cols(w_qkv, wcol),          # rows [0, H*D)
        _pad_cols(params["wo"], wcol),   # rows [H*D, H*D+D)      (= (H,Dh,D) head-major)
        _pad_cols(params["w1"], wcol),   # rows [H*D+D, H*D+2D)
        _pad_cols(params["w2"], wcol),   # rows [H*D+2D, H*D+2D+d_ff)
    ], axis=0))

    # Slab 2: all bias / LayerNorm vectors.
    vecs = _pad_rows_to_8(jnp.concatenate([
        _pad_cols(b_qkv_rep, wcol),
        _pad_cols(params["bo"], wcol),
        _pad_cols(params["g1"], wcol),
        _pad_cols(params["be1"], wcol),
        _pad_cols(params["bf1"], wcol),
        _pad_cols(params["bf2"], wcol),
        _pad_cols(params["g2"], wcol),
        _pad_cols(params["be2"], wcol),
    ], axis=0))

    # Flat (B*S, D) activation slab in and out (wrapper-side reshape is free).
    x2 = x.reshape(B * S, D)

    # ---- cost estimate (whole call) ----------------------------------------
    R = B * S
    flops = (2 * R * D * 3 * D                # fused QKV projection
             + 2 * B * H * S * S * Dh * 2     # scores + attn @ V
             + 2 * R * D * D                  # out projection (head-batched)
             + 2 * R * D * d_ff               # FFN up
             + 2 * R * d_ff * D)              # FFN down
    transcendentals = B * H * S * S + B * H * S + 2 * R   # exp + recip + rsqrt
    bytes_accessed = 4 * (2 * R * D + mats.size + vecs.size)

    kernel = partial(encoder_layer_kernel, batch=batch_block, seq=S,
                     heads=H, d_model=D, d_ff=d_ff)
    out2 = pl.pallas_call(
        kernel,
        out_shape=jax.ShapeDtypeStruct((B * S, D), x.dtype),
        grid=(n_blocks,),
        in_specs=[pl.BlockSpec((rows, D), lambda i: (i, 0)),
                  pl.BlockSpec(mats.shape, lambda i: (0, 0)),
                  pl.BlockSpec(vecs.shape, lambda i: (0, 0))],
        out_specs=pl.BlockSpec((rows, D), lambda i: (i, 0)),
        compiler_params=pltpu.CompilerParams(
            dimension_semantics=("parallel",),
            vmem_limit_bytes=32 * 1024 * 1024),
        cost_estimate=pl.CostEstimate(flops=flops,
                                      transcendentals=transcendentals,
                                      bytes_accessed=bytes_accessed),
    )(x2, mats, vecs)
    return out2.reshape(B, S, D)


def reference(x, p):
    """Pure-JAX reference of the same forward (eval-mode dropout = identity)."""
    B, S, D = x.shape
    H, Dh = HEADS, D // HEADS
    q = x @ p["wq"] + p["bq"]
    k = x @ p["wk"] + p["bk"]
    v = x @ p["wv"] + p["bv"]
    q = q.reshape(B, S, H, Dh).transpose(0, 2, 1, 3)
    k = k.reshape(B, S, H, Dh).transpose(0, 2, 1, 3)
    v = v.reshape(B, S, H, Dh).transpose(0, 2, 1, 3)
    s = jnp.einsum("bhqd,bhkd->bhqk", q, k) / math.sqrt(Dh)
    a = jax.nn.softmax(s, axis=-1)
    o = jnp.einsum("bhqk,bhkd->bhqd", a, v).transpose(0, 2, 1, 3).reshape(B, S, D)
    o = o @ p["wo"] + p["bo"]

    def ln(h, g, b):
        mu = jnp.mean(h, axis=-1, keepdims=True)
        var = jnp.mean((h - mu) ** 2, axis=-1, keepdims=True)
        return (h - mu) * jax.lax.rsqrt(var + EPS) * g + b

    h1 = ln(o + x, p["g1"], p["be1"])
    f = jnp.maximum(h1 @ p["w1"] + p["bf1"], 0.0) @ p["w2"] + p["bf2"]
    return ln(f + h1, p["g2"], p["be2"])


if __name__ == "__main__":
    B, S = 2, 8
    key = jax.random.PRNGKey(0)
    kx, kp = jax.random.split(key)
    x = jax.random.normal(kx, (B, S, D_MODEL), jnp.float32)
    params = init_params(kp)

    out = jax.jit(transformer_encoder_layer)(x, params)
    out = jax.block_until_ready(out)

    ref = reference(x, params)
    assert out.shape == (B, S, D_MODEL)
    err = float(jnp.max(jnp.abs(out - ref)))
    # approx-reciprocal softmax denominator -> slightly relaxed tolerance vs f32 ref
    assert err < 2e-3, f"max abs err {err}"
    print("KERNEL_OK")
</pallas_src>

<mosaic_0001>
module attributes {stable_mosaic.version = 11 : i64} {
  func.func @encoder_layer_kernel(%arg0: i32, %arg1: memref<16x32xf32, #tpu.memory_space<vmem>>, %arg2: memref<256x64xf32, #tpu.memory_space<vmem>>, %arg3: memref<72x64xf32, #tpu.memory_space<vmem>>, %arg4: memref<16x32xf32, #tpu.memory_space<vmem>>) attributes {dimension_semantics = [#tpu.dimension_semantics<parallel>], iteration_bounds = array<i64: 1>, scalar_prefetch = 0 : i64, scratch_operands = 0 : i64, tpu.core_type = #tpu.core_type<tc>, window_params = [{transform_indices = @transform_0, window_bounds = array<i64: 16, 32>}, {pipeline_mode = #tpu.pipeline_mode<synchronous>, transform_indices = @transform_1, window_bounds = array<i64: 256, 64>}, {pipeline_mode = #tpu.pipeline_mode<synchronous>, transform_indices = @transform_2, window_bounds = array<i64: 72, 64>}, {transform_indices = @transform_3, window_bounds = array<i64: 16, 32>}]} {
    %c0 = arith.constant 0 : index
    %c0_0 = arith.constant 0 : index
    %0 = vector.load %arg1[%c0, %c0_0] : memref<16x32xf32, #tpu.memory_space<vmem>>, vector<16x32xf32>
    %c0_1 = arith.constant 0 : index
    %c0_2 = arith.constant 0 : index
    %1 = vector.load %arg2[%c0_1, %c0_2] : memref<256x64xf32, #tpu.memory_space<vmem>>, vector<128x24xf32>
    %2 = vector.shape_cast %1 : vector<128x24xf32> to vector<4x32x24xf32>
    %c128 = arith.constant 128 : index
    %c0_3 = arith.constant 0 : index
    %3 = vector.load %arg2[%c128, %c0_3] : memref<256x64xf32, #tpu.memory_space<vmem>>, vector<32x32xf32>
    %4 = vector.shape_cast %3 : vector<32x32xf32> to vector<4x8x32xf32>
    %c160 = arith.constant 160 : index
    %c0_4 = arith.constant 0 : index
    %5 = vector.load %arg2[%c160, %c0_4] : memref<256x64xf32, #tpu.memory_space<vmem>>, vector<32x64xf32>
    %c192 = arith.constant 192 : index
    %c0_5 = arith.constant 0 : index
    %6 = vector.load %arg2[%c192, %c0_5] : memref<256x64xf32, #tpu.memory_space<vmem>>, vector<64x32xf32>
    %c0_6 = arith.constant 0 : index
    %c0_7 = arith.constant 0 : index
    %7 = vector.load %arg3[%c0_6, %c0_7] : memref<72x64xf32, #tpu.memory_space<vmem>>, vector<64x24xf32>
    %8 = vector.shape_cast %7 : vector<64x24xf32> to vector<4x16x24xf32>
    %c64 = arith.constant 64 : index
    %c0_8 = arith.constant 0 : index
    %9 = vector.load %arg3[%c64, %c0_8] : memref<72x64xf32, #tpu.memory_space<vmem>>, vector<1x32xf32>
    %c65 = arith.constant 65 : index
    %c0_9 = arith.constant 0 : index
    %10 = vector.load %arg3[%c65, %c0_9] : memref<72x64xf32, #tpu.memory_space<vmem>>, vector<1x32xf32>
    %c66 = arith.constant 66 : index
    %c0_10 = arith.constant 0 : index
    %11 = vector.load %arg3[%c66, %c0_10] : memref<72x64xf32, #tpu.memory_space<vmem>>, vector<1x32xf32>
    %c67 = arith.constant 67 : index
    %c0_11 = arith.constant 0 : index
    %12 = vector.load %arg3[%c67, %c0_11] : memref<72x64xf32, #tpu.memory_space<vmem>>, vector<1x64xf32>
    %c68 = arith.constant 68 : index
    %c0_12 = arith.constant 0 : index
    %13 = vector.load %arg3[%c68, %c0_12] : memref<72x64xf32, #tpu.memory_space<vmem>>, vector<1x32xf32>
    %c69 = arith.constant 69 : index
    %c0_13 = arith.constant 0 : index
    %14 = vector.load %arg3[%c69, %c0_13] : memref<72x64xf32, #tpu.memory_space<vmem>>, vector<1x32xf32>
    %c70 = arith.constant 70 : index
    %c0_14 = arith.constant 0 : index
    %15 = vector.load %arg3[%c70, %c0_14] : memref<72x64xf32, #tpu.memory_space<vmem>>, vector<1x32xf32>
    %16 = vector.shape_cast %0 : vector<16x32xf32> to vector<1x16x32xf32>
    %17 = vector.broadcast %16 : vector<1x16x32xf32> to vector<4x16x32xf32>
    "tpu.trace_start"() <{level = 10 : i32, message = "hrd,hde->hre"}> : () -> ()
    %cst = arith.constant dense<0.000000e+00> : vector<4x16x24xf32>
    %18 = tpu.matmul %17, %2, %cst {dimension_numbers = #tpu.dot_dimension_numbers<[2], [1], [1], [2], [0, 0, 0, 1, 1, 2], [0], [0]>} : vector<4x16x32xf32>, vector<4x32x24xf32>, vector<4x16x24xf32> -> vector<4x16x24xf32>
    "tpu.trace_stop"() : () -> ()
    %19 = arith.addf %18, %8 : vector<4x16x24xf32>
    %20 = vector.shape_cast %19 : vector<4x16x24xf32> to vector<8x8x24xf32>
    %21 = vector.extract_strided_slice %20 {offsets = [0, 0, 0], sizes = [8, 8, 8], strides = [1, 1, 1]} : vector<8x8x24xf32> to vector<8x8x8xf32>
    %22 = vector.extract_strided_slice %20 {offsets = [0, 0, 8], sizes = [8, 8, 8], strides = [1, 1, 1]} : vector<8x8x24xf32> to vector<8x8x8xf32>
    %23 = vector.extract_strided_slice %20 {offsets = [0, 0, 16], sizes = [8, 8, 8], strides = [1, 1, 1]} : vector<8x8x24xf32> to vector<8x8x8xf32>
    "tpu.trace_start"() <{level = 10 : i32, message = "nqd,nkd->nqk"}> : () -> ()
    %cst_15 = arith.constant dense<0.000000e+00> : vector<8x8x8xf32>
    %24 = tpu.matmul %21, %22, %cst_15 {dimension_numbers = #tpu.dot_dimension_numbers<[2], [2], [1], [1], [0, 0, 0, 1, 1, 1], [0], [0]>} : vector<8x8x8xf32>, vector<8x8x8xf32>, vector<8x8x8xf32> -> vector<8x8x8xf32>
    "tpu.trace_stop"() : () -> ()
    %cst_16 = arith.constant dense<0xFF800000> : vector<8x8xf32>
    %25 = vector.multi_reduction <maximumf>, %24, %cst_16 [2] : vector<8x8x8xf32> to vector<8x8xf32>
    %26 = vector.shape_cast %25 : vector<8x8xf32> to vector<8x8x1xf32>
    %27 = vector.broadcast %26 : vector<8x8x1xf32> to vector<8x8x8xf32>
    %28 = arith.subf %24, %27 : vector<8x8x8xf32>
    %29 = math.exp %28 : vector<8x8x8xf32>
    %cst_17 = arith.constant dense<0.000000e+00> : vector<8x8xf32>
    %30 = vector.multi_reduction <add>, %29, %cst_17 [2] : vector<8x8x8xf32> to vector<8x8xf32>
    %31 = vector.shape_cast %30 : vector<8x8xf32> to vector<8x8x1xf32>
    %32 = tpu.reciprocal %31 {approx = true} : vector<8x8x1xf32> -> vector<8x8x1xf32>
    %33 = vector.broadcast %32 : vector<8x8x1xf32> to vector<8x8x8xf32>
    %34 = arith.mulf %29, %33 : vector<8x8x8xf32>
    "tpu.trace_start"() <{level = 10 : i32, message = "nqk,nkd->nqd"}> : () -> ()
    %cst_18 = arith.constant dense<0.000000e+00> : vector<8x8x8xf32>
    %35 = tpu.matmul %34, %23, %cst_18 {dimension_numbers = #tpu.dot_dimension_numbers<[2], [1], [1], [2], [0, 0, 0, 1, 1, 2], [0], [0]>} : vector<8x8x8xf32>, vector<8x8x8xf32>, vector<8x8x8xf32> -> vector<8x8x8xf32>
    "tpu.trace_stop"() : () -> ()
    %36 = vector.shape_cast %35 : vector<8x8x8xf32> to vector<4x16x8xf32>
    "tpu.trace_start"() <{level = 10 : i32, message = "hrd,hdm->hrm"}> : () -> ()
    %cst_19 = arith.constant dense<0.000000e+00> : vector<4x16x32xf32>
    %37 = tpu.matmul %36, %4, %cst_19 {dimension_numbers = #tpu.dot_dimension_numbers<[2], [1], [1], [2], [0, 0, 0, 1, 1, 2], [0], [0]>} : vector<4x16x8xf32>, vector<4x8x32xf32>, vector<4x16x32xf32> -> vector<4x16x32xf32>
    "tpu.trace_stop"() : () -> ()
    %38 = vector.extract_strided_slice %37 {offsets = [0, 0, 0], sizes = [1, 16, 32], strides = [1, 1, 1]} : vector<4x16x32xf32> to vector<1x16x32xf32>
    %39 = vector.shape_cast %38 : vector<1x16x32xf32> to vector<16x32xf32>
    %40 = vector.broadcast %9 : vector<1x32xf32> to vector<16x32xf32>
    %41 = arith.addf %40, %39 : vector<16x32xf32>
    %42 = vector.extract_strided_slice %37 {offsets = [1, 0, 0], sizes = [1, 16, 32], strides = [1, 1, 1]} : vector<4x16x32xf32> to vector<1x16x32xf32>
    %43 = vector.shape_cast %42 : vector<1x16x32xf32> to vector<16x32xf32>
    %44 = arith.addf %41, %43 : vector<16x32xf32>
    %45 = vector.extract_strided_slice %37 {offsets = [2, 0, 0], sizes = [1, 16, 32], strides = [1, 1, 1]} : vector<4x16x32xf32> to vector<1x16x32xf32>
    %46 = vector.shape_cast %45 : vector<1x16x32xf32> to vector<16x32xf32>
    %47 = arith.addf %44, %46 : vector<16x32xf32>
    %48 = vector.extract_strided_slice %37 {offsets = [3, 0, 0], sizes = [1, 16, 32], strides = [1, 1, 1]} : vector<4x16x32xf32> to vector<1x16x32xf32>
    %49 = vector.shape_cast %48 : vector<1x16x32xf32> to vector<16x32xf32>
    %50 = arith.addf %47, %49 : vector<16x32xf32>
    %51 = arith.addf %50, %0 : vector<16x32xf32>
    %cst_20 = arith.constant dense<0.000000e+00> : vector<16xf32>
    %52 = vector.multi_reduction <add>, %51, %cst_20 [1] : vector<16x32xf32> to vector<16xf32>
    %53 = vector.shape_cast %52 : vector<16xf32> to vector<16x1xf32>
    %cst_21 = arith.constant 3.200000e+01 : f32
    %54 = vector.broadcast %cst_21 : f32 to vector<16x1xf32>
    %55 = arith.divf %53, %54 : vector<16x1xf32>
    %56 = vector.broadcast %55 : vector<16x1xf32> to vector<16x32xf32>
    %57 = arith.subf %51, %56 : vector<16x32xf32>
    %58 = arith.mulf %57, %57 : vector<16x32xf32>
    %cst_22 = arith.constant dense<0.000000e+00> : vector<16xf32>
    %59 = vector.multi_reduction <add>, %58, %cst_22 [1] : vector<16x32xf32> to vector<16xf32>
    %60 = vector.shape_cast %59 : vector<16xf32> to vector<16x1xf32>
    %cst_23 = arith.constant 3.200000e+01 : f32
    %61 = vector.broadcast %cst_23 : f32 to vector<16x1xf32>
    %62 = arith.divf %60, %61 : vector<16x1xf32>
    %cst_24 = arith.constant 9.99999974E-6 : f32
    %63 = vector.broadcast %cst_24 : f32 to vector<16x1xf32>
    %64 = arith.addf %62, %63 : vector<16x1xf32>
    %65 = math.rsqrt %64 : vector<16x1xf32>
    %66 = vector.broadcast %65 : vector<16x1xf32> to vector<16x32xf32>
    %67 = arith.mulf %57, %66 : vector<16x32xf32>
    %68 = vector.broadcast %10 : vector<1x32xf32> to vector<16x32xf32>
    %69 = arith.mulf %67, %68 : vector<16x32xf32>
    %70 = vector.broadcast %11 : vector<1x32xf32> to vector<16x32xf32>
    %71 = arith.addf %69, %70 : vector<16x32xf32>
    %cst_25 = arith.constant dense<0.000000e+00> : vector<16x64xf32>
    %72 = tpu.matmul %71, %5, %cst_25 {dimension_numbers = #tpu.dot_dimension_numbers<[1], [0], [0], [1], [0, 0, 1, 1], [], []>} : vector<16x32xf32>, vector<32x64xf32>, vector<16x64xf32> -> vector<16x64xf32>
    %73 = vector.broadcast %12 : vector<1x64xf32> to vector<16x64xf32>
    %74 = arith.addf %72, %73 : vector<16x64xf32>
    %cst_26 = arith.constant 0.000000e+00 : f32
    %75 = vector.broadcast %cst_26 : f32 to vector<16x64xf32>
    %76 = arith.maximumf %74, %75 : vector<16x64xf32>
    %cst_27 = arith.constant dense<0.000000e+00> : vector<16x32xf32>
    %77 = tpu.matmul %76, %6, %cst_27 {dimension_numbers = #tpu.dot_dimension_numbers<[1], [0], [0], [1], [0, 0, 1, 1], [], []>} : vector<16x64xf32>, vector<64x32xf32>, vector<16x32xf32> -> vector<16x32xf32>
    %78 = vector.broadcast %13 : vector<1x32xf32> to vector<16x32xf32>
    %79 = arith.addf %77, %78 : vector<16x32xf32>
    %80 = arith.addf %79, %71 : vector<16x32xf32>
    %cst_28 = arith.constant dense<0.000000e+00> : vector<16xf32>
    %81 = vector.multi_reduction <add>, %80, %cst_28 [1] : vector<16x32xf32> to vector<16xf32>
    %82 = vector.shape_cast %81 : vector<16xf32> to vector<16x1xf32>
    %cst_29 = arith.constant 3.200000e+01 : f32
    %83 = vector.broadcast %cst_29 : f32 to vector<16x1xf32>
    %84 = arith.divf %82, %83 : vector<16x1xf32>
    %85 = vector.broadcast %84 : vector<16x1xf32> to vector<16x32xf32>
    %86 = arith.subf %80, %85 : vector<16x32xf32>
    %87 = arith.mulf %86, %86 : vector<16x32xf32>
    %cst_30 = arith.constant dense<0.000000e+00> : vector<16xf32>
    %88 = vector.multi_reduction <add>, %87, %cst_30 [1] : vector<16x32xf32> to vector<16xf32>
    %89 = vector.shape_cast %88 : vector<16xf32> to vector<16x1xf32>
    %cst_31 = arith.constant 3.200000e+01 : f32
    %90 = vector.broadcast %cst_31 : f32 to vector<16x1xf32>
    %91 = arith.divf %89, %90 : vector<16x1xf32>
    %cst_32 = arith.constant 9.99999974E-6 : f32
    %92 = vector.broadcast %cst_32 : f32 to vector<16x1xf32>
    %93 = arith.addf %91, %92 : vector<16x1xf32>
    %94 = math.rsqrt %93 : vector<16x1xf32>
    %95 = vector.broadcast %94 : vector<16x1xf32> to vector<16x32xf32>
    %96 = arith.mulf %86, %95 : vector<16x32xf32>
    %97 = vector.broadcast %14 : vector<1x32xf32> to vector<16x32xf32>
    %98 = arith.mulf %96, %97 : vector<16x32xf32>
    %99 = vector.broadcast %15 : vector<1x32xf32> to vector<16x32xf32>
    %100 = arith.addf %98, %99 : vector<16x32xf32>
    %c0_33 = arith.constant 0 : index
    %c0_34 = arith.constant 0 : index
    %101 = vector.load %arg4[%c0_33, %c0_34] : memref<16x32xf32, #tpu.memory_space<vmem>>, vector<16x32xf32>
    tpu.vector_store %arg4[%c0_33, %c0_34], %100 {strides = array<i32>} : memref<16x32xf32, #tpu.memory_space<vmem>>, vector<16x32xf32>,
    return
  }
  func.func @transform_0(%arg0: i32) -> (i32, i32) {
    %c0_i32 = arith.constant 0 : i32
    %c0_i32_0 = arith.constant 0 : i32
    return %arg0, %c0_i32 : i32, i32
  }
  func.func @transform_1(%arg0: i32) -> (i32, i32) {
    %c0_i32 = arith.constant 0 : i32
    %c0_i32_0 = arith.constant 0 : i32
    %c0_i32_1 = arith.constant 0 : i32
    return %c0_i32, %c0_i32_0 : i32, i32
  }
  func.func @transform_2(%arg0: i32) -> (i32, i32) {
    %c0_i32 = arith.constant 0 : i32
    %c0_i32_0 = arith.constant 0 : i32
    %c0_i32_1 = arith.constant 0 : i32
    return %c0_i32, %c0_i32_0 : i32, i32
  }
  func.func @transform_3(%arg0: i32) -> (i32, i32) {
    %c0_i32 = arith.constant 0 : i32
    %c0_i32_0 = arith.constant 0 : i32
    return %arg0, %c0_i32 : i32, i32
  }
}

</mosaic_0001>

<llo_original>
// kernel: transformer_encoder_layer.1
$region0: #{transformer_encoder_layer.1}
  #allocation0 [shape = 'u32[]', space=smem, size = 0x4, offset = 0x4, fixed_abs, tag = 'smem constant byte address 0x4 - core index']
  #allocation1 [shape = 'u32[144,128]{1,0:T(1,128)}', space=vmem, size = 0x12000, scoped, tag = 'internal scratch']
  %s0 = inlined_call_operand.vmem [shape: f32[16,32], index: 0, kind: input, shape index: {}]
  %s1 = inlined_call_operand.vmem [shape: f32[256,64], index: 1, kind: input, shape index: {}]
  %s2 = inlined_call_operand.vmem [shape: f32[72,64], index: 2, kind: input, shape index: {}]
  %s3 = inlined_call_operand.hbm [shape: f32[16,32], index: 3, kind: output, shape index: {}]
  %s4 = sld [smem:[#allocation0]]
  $region22: #{transformer_encoder_layer.1} parent=0
    _
  %s6 = ssub.s32 1, %s4
  %s7 = scalar_select 0, %s6, %s4
  $region1: #{transformer_encoder_layer.1} parent=0
    #allocation2 [shape = 'u8[8192]{0}', space=vmem, size = 0x2000, scoped, tag = 'output window, operand 0, single buffered']
    #allocation3 [shape = 's32[1]{0}', space=sflag, size = 0x4, scoped, tag = 'scoped memory for transformer_encoder_layer.1']
    %8 = vsyncpa [#allocation3], 0
    // Predicated region
    $region2: #{transformer_encoder_layer.1} parent=1 // pred_check
      _
    $region3: #{transformer_encoder_layer.1} parent=1 // pred_check_branch
      %10 = sbr.rel (0) target = $region5
    $region4: #{transformer_encoder_layer.1} parent=1 // pred_region
      _
    $region5: #{transformer_encoder_layer.1} parent=1 // pred_fallthru
      _
    // Predicated region
    $region6: #{transformer_encoder_layer.1} parent=1 // pred_check
      _
    $region7: #{transformer_encoder_layer.1} parent=1 // pred_check_branch
      %12 = sbr.rel (0) target = $region9
    $region8: #{transformer_encoder_layer.1} parent=1 // pred_region
      _
    $region9: #{transformer_encoder_layer.1} parent=1 // pred_fallthru
      _
    // Predicated region
    $region10: #{transformer_encoder_layer.1} parent=1 // pred_check
      _
    $region11: #{transformer_encoder_layer.1} parent=1 // pred_check_branch
      %14 = sbr.rel (0) target = $region13
    $region12: #{transformer_encoder_layer.1} parent=1 // pred_region
      _
    $region13: #{transformer_encoder_layer.1} parent=1 // pred_fallthru
      _
    %v15 = vld [vmem:[%s0] sm:$0xff]
    %v16 = vld [vmem:[%s0 + $0x8] sm:$0xff]
    %v17 = vld [vmem:[%s1] sm:$0xff]
    %v18 = vld [vmem:[%s1 + $0x8] sm:$0xff]
    %v19 = vld [vmem:[%s1 + $0x10] sm:$0xff]
    %v20 = vld [vmem:[%s1 + $0x18] sm:$0xff]
    %v21 = vld [vmem:[%s1 + $0x20] sm:$0xff]
    %v22 = vld [vmem:[%s1 + $0x28] sm:$0xff]
    %v23 = vld [vmem:[%s1 + $0x30] sm:$0xff]
    %v24 = vld [vmem:[%s1 + $0x38] sm:$0xff]
    %v25 = vld [vmem:[%s1 + $0x40] sm:$0xff]
    %v26 = vld [vmem:[%s1 + $0x48] sm:$0xff]
    %v27 = vld [vmem:[%s1 + $0x50] sm:$0xff]
    %v28 = vld [vmem:[%s1 + $0x58] sm:$0xff]
    %v29 = vld [vmem:[%s1 + $0x60] sm:$0xff]
    %v30 = vld [vmem:[%s1 + $0x68] sm:$0xff]
    %v31 = vld [vmem:[%s1 + $0x70] sm:$0xff]
    %v32 = vld [vmem:[%s1 + $0x78] sm:$0xff]
    %v33 = vld [vmem:[%s1 + $0x80] sm:$0xff]
    %v34 = vld [vmem:[%s1 + $0x88] sm:$0xff]
    %v35 = vld [vmem:[%s1 + $0x90] sm:$0xff]
    %v36 = vld [vmem:[%s1 + $0x98] sm:$0xff]
    %v37 = vld [vmem:[%s1 + $0xa0] sm:$0xff]
    %v38 = vld [vmem:[%s1 + $0xa8] sm:$0xff]
    %v39 = vld [vmem:[%s1 + $0xb0] sm:$0xff]
    %v40 = vld [vmem:[%s1 + $0xb8] sm:$0xff]
    %v41 = vld [vmem:[%s1 + $0xc0] sm:$0xff]
    %v42 = vld [vmem:[%s1 + $0xc8] sm:$0xff]
    %v43 = vld [vmem:[%s1 + $0xd0] sm:$0xff]
    %v44 = vld [vmem:[%s1 + $0xd8] sm:$0xff]
    %v45 = vld [vmem:[%s1 + $0xe0] sm:$0xff]
    %v46 = vld [vmem:[%s1 + $0xe8] sm:$0xff]
    %v47 = vld [vmem:[%s1 + $0xf0] sm:$0xff]
    %v48 = vld [vmem:[%s1 + $0xf8] sm:$0xff]
    %v49 = vld [vmem:[%s2] sm:$0xff]
    %v50 = vld [vmem:[%s2 + $0x8] sm:$0xff]
    %v51 = vld [vmem:[%s2 + $0x10] sm:$0xff]
    %v52 = vld [vmem:[%s2 + $0x18] sm:$0xff]
    %v53 = vld [vmem:[%s2 + $0x20] sm:$0xff]
    %v54 = vld [vmem:[%s2 + $0x28] sm:$0xff]
    %v55 = vld [vmem:[%s2 + $0x30] sm:$0xff]
    %v56 = vld [vmem:[%s2 + $0x38] sm:$0xff]
    %v57 = vld [vmem:[%s2 + $0x40] sm:$0x1]
    %v58 = vld [vmem:[%s2 + $0x41] sm:$0x1]
    %v59 = vld [vmem:[%s2 + $0x42] sm:$0x1]
    %v60 = vld [vmem:[%s2 + $0x43] sm:$0x1]
    %v61 = vld [vmem:[%s2 + $0x44] sm:$0x1]
    %v62 = vld [vmem:[%s2 + $0x45] sm:$0x1]
    %v63 = vld [vmem:[%s2 + $0x46] sm:$0x1]
    %vm64 = vcmask 261120
    %v66 = vsel %vm64, %v15, 0
    %v69 = vsel %vm64, %v16, 0
    %71 = vmatprep.subr.mxu0 0.0
    %72 = vmatpush1.msra.mxu0 %v17
    %73 = vmatprep.subr.mxu0 0.0
    %74 = vmatpush1.msra.mxu0 %v18
    %75 = vmatprep.subr.mxu0 0.0
    %76 = vmatpush1.msra.mxu0 %v19
    %77 = vmatprep.subr.mxu0 0.0
    %78 = vmatpush1.msra.mxu0 %v20
    %79 = vmatprep.subr.mxu0 0.0
    %80 = vmatpush1.msra.mxu0 0.0
    %81 = vmatprep.subr.mxu0 0.0
    %82 = vmatpush1.msra.mxu0 0.0
    %83 = vmatprep.subr.mxu0 0.0
    %84 = vmatpush1.msra.mxu0 0.0
    %85 = vmatprep.subr.mxu0 0.0
    %86 = vmatpush1.msra.mxu0 0.0
    %87 = vmatprep.subr.mxu0 0.0
    %88 = vmatpush1.msra.mxu0 0.0
    %89 = vmatprep.subr.mxu0 0.0
    %90 = vmatpush1.msra.mxu0 0.0
    %91 = vmatprep.subr.mxu0 0.0
    %92 = vmatpush1.msra.mxu0 0.0
    %93 = vmatprep.subr.mxu0 0.0
    %94 = vmatpush1.msra.mxu0 0.0
    %95 = vmatprep.subr.mxu0 0.0
    %96 = vmatpush1.msra.mxu0 0.0
    %97 = vmatprep.subr.mxu0 0.0
    %98 = vmatpush1.msra.mxu0 0.0
    %99 = vmatprep.subr.mxu0 0.0
    %100 = vmatpush1.msra.mxu0 0.0
    %101 = vmatprep.subr.mxu0 0.0
    %102 = vmatpush1.msra.mxu0 0.0
    %103 = vmatprep.subr.mxu0 0.0
    %104 = vmatpush1.msra.mxu0 0.0
    %105 = vmatprep.subr.mxu0 0.0
    %106 = vmatpush1.msra.mxu0 0.0
    %107 = vmatprep.subr.mxu0 0.0
    %108 = vmatpush1.msra.mxu0 0.0
    %109 = vmatprep.subr.mxu0 0.0
    %110 = vmatpush1.msra.mxu0 0.0
    %111 = vmatprep.subr.mxu0 0.0
    %112 = vmatpush1.msra.mxu0 0.0
    %113 = vmatprep.subr.mxu0 0.0
    %114 = vmatpush1.msra.mxu0 0.0
    %115 = vmatprep.subr.mxu0 0.0
    %116 = vmatpush1.msra.mxu0 0.0
    %117 = vmatprep.subr.mxu0 0.0
    %118 = vmatpush1.msra.mxu0 0.0
    %119 = vmatprep.subr.mxu0 0.0
    %120 = vmatpush1.msra.mxu0 0.0
    %121 = vmatprep.subr.mxu0 0.0
    %122 = vmatpush1.msra.mxu0 0.0
    %123 = vmatprep.subr.mxu0 0.0
    %124 = vmatpush1.msra.mxu0 0.0
    %125 = vmatprep.subr.mxu0 0.0
    %126 = vmatpush1.msra.mxu0 0.0
    %127 = vmatprep.subr.mxu0 0.0
    %128 = vmatpush1.msra.mxu0 0.0
    %129 = vmatprep.subr.mxu0 0.0
    %130 = vmatpush1.msra.mxu0 0.0
    %131 = vmatprep.subr.mxu0 0.0
    %132 = vmatpush1.msra.mxu0 0.0
    %133 = vmatprep.subr.mxu0 0.0
    %134 = vmatpush1.msra.mxu0 0.0
    %135 = vmatprep.mubr.f32.mxu0 0.0
    %136 = vmatmul.mubr.f32.gmra.mrb[0].mxu0 %v66
    %v137 = vpop.f32.mrb[0].mxu0
    %v138 = vadd.f32 %v49, %v137
    %v139 = vpop.f32.mrb[0].mxu0
    %140 = vmatprep.mubr.f32.mxu0 0.0
    %141 = vmatmul.mubr.f32.gmra.mrb[0].mxu0 %v69
    %v142 = vpop.f32.mrb[0].mxu0
    %v143 = vadd.f32 %v50, %v142
    %v144 = vpop.f32.mrb[0].mxu0
    %145 = vdwg.mxu0
    %146 = vmatprep.subr.mxu0 0.0
    %147 = vmatpush1.msra.mxu0 %v21
    %148 = vmatprep.subr.mxu0 0.0
    %149 = vmatpush1.msra.mxu0 %v22
    %150 = vmatprep.subr.mxu0 0.0
    %151 = vmatpush1.msra.mxu0 %v23
    %152 = vmatprep.subr.mxu0 0.0
    %153 = vmatpush1.msra.mxu0 %v24
    %154 = vmatprep.subr.mxu0 0.0
    %155 = vmatpush1.msra.mxu0 0.0
    %156 = vmatprep.subr.mxu0 0.0
    %157 = vmatpush1.msra.mxu0 0.0
    %158 = vmatprep.subr.mxu0 0.0
    %159 = vmatpush1.msra.mxu0 0.0
    %160 = vmatprep.subr.mxu0 0.0
    %161 = vmatpush1.msra.mxu0 0.0
    %162 = vmatprep.subr.mxu0 0.0
    %163 = vmatpush1.msra.mxu0 0.0
    %164 = vmatprep.subr.mxu0 0.0
    %165 = vmatpush1.msra.mxu0 0.0
    %166 = vmatprep.subr.mxu0 0.0
    %167 = vmatpush1.msra.mxu0 0.0
    %168 = vmatprep.subr.mxu0 0.0
    %169 = vmatpush1.msra.mxu0 0.0
    %170 = vmatprep.subr.mxu0 0.0
    %171 = vmatpush1.msra.mxu0 0.0
    %172 = vmatprep.subr.mxu0 0.0
    %173 = vmatpush1.msra.mxu0 0.0
    %174 = vmatprep.subr.mxu0 0.0
    %175 = vmatpush1.msra.mxu0 0.0
    %176 = vmatprep.subr.mxu0 0.0
    %177 = vmatpush1.msra.mxu0 0.0
    %178 = vmatprep.subr.mxu0 0.0
    %179 = vmatpush1.msra.mxu0 0.0
    %180 = vmatprep.subr.mxu0 0.0
    %181 = vmatpush1.msra.mxu0 0.0
    %182 = vmatprep.subr.mxu0 0.0
    %183 = vmatpush1.msra.mxu0 0.0
    %184 = vmatprep.subr.mxu0 0.0
    %185 = vmatpush1.msra.mxu0 0.0
    %186 = vmatprep.subr.mxu0 0.0
    %187 = vmatpush1.msra.mxu0 0.0
    %188 = vmatprep.subr.mxu0 0.0
    %189 = vmatpush1.msra.mxu0 0.0
    %190 = vmatprep.subr.mxu0 0.0
    %191 = vmatpush1.msra.mxu0 0.0
    %192 = vmatprep.subr.mxu0 0.0
    %193 = vmatpush1.msra.mxu0 0.0
    %194 = vmatprep.subr.mxu0 0.0
    %195 = vmatpush1.msra.mxu0 0.0
    %196 = vmatprep.subr.mxu0 0.0
    %197 = vmatpush1.msra.mxu0 0.0
    %198 = vmatprep.subr.mxu0 0.0
    %199 = vmatpush1.msra.mxu0 0.0
    %200 = vmatprep.subr.mxu0 0.0
    %201 = vmatpush1.msra.mxu0 0.0
    %202 = vmatprep.subr.mxu0 0.0
    %203 = vmatpush1.msra.mxu0 0.0
    %204 = vmatprep.subr.mxu0 0.0
    %205 = vmatpush1.msra.mxu0 0.0
    %206 = vmatprep.subr.mxu0 0.0
    %207 = vmatpush1.msra.mxu0 0.0
    %208 = vmatprep.subr.mxu0 0.0
    %209 = vmatpush1.msra.mxu0 0.0
    %210 = vmatprep.mubr.f32.mxu0 0.0
    %211 = vmatmul.mubr.f32.gmra.mrb[0].mxu0 %v66
    %v212 = vpop.f32.mrb[0].mxu0
    %v213 = vadd.f32 %v51, %v212
    %v214 = vpop.f32.mrb[0].mxu0
    %215 = vmatprep.mubr.f32.mxu0 0.0
    %216 = vmatmul.mubr.f32.gmra.mrb[0].mxu0 %v69
    %v217 = vpop.f32.mrb[0].mxu0
    %v218 = vadd.f32 %v52, %v217
    %v219 = vpop.f32.mrb[0].mxu0
    %220 = vdwg.mxu0
    %221 = vmatprep.subr.mxu0 0.0
    %222 = vmatpush1.msra.mxu0 %v25
    %223 = vmatprep.subr.mxu0 0.0
    %224 = vmatpush1.msra.mxu0 %v26
    %225 = vmatprep.subr.mxu0 0.0
    %226 = vmatpush1.msra.mxu0 %v27
    %227 = vmatprep.subr.mxu0 0.0
    %228 = vmatpush1.msra.mxu0 %v28
    %229 = vmatprep.subr.mxu0 0.0
    %230 = vmatpush1.msra.mxu0 0.0
    %231 = vmatprep.subr.mxu0 0.0
    %232 = vmatpush1.msra.mxu0 0.0
    %233 = vmatprep.subr.mxu0 0.0
    %234 = vmatpush1.msra.mxu0 0.0
    %235 = vmatprep.subr.mxu0 0.0
    %236 = vmatpush1.msra.mxu0 0.0
    %237 = vmatprep.subr.mxu0 0.0
    %238 = vmatpush1.msra.mxu0 0.0
    %239 = vmatprep.subr.mxu0 0.0
    %240 = vmatpush1.msra.mxu0 0.0
    %241 = vmatprep.subr.mxu0 0.0
    %242 = vmatpush1.msra.mxu0 0.0
    %243 = vmatprep.subr.mxu0 0.0
    %244 = vmatpush1.msra.mxu0 0.0
    %245 = vmatprep.subr.mxu0 0.0
    %246 = vmatpush1.msra.mxu0 0.0
    %247 = vmatprep.subr.mxu0 0.0
    %248 = vmatpush1.msra.mxu0 0.0
    %249 = vmatprep.subr.mxu0 0.0
    %250 = vmatpush1.msra.mxu0 0.0
    %251 = vmatprep.subr.mxu0 0.0
    %252 = vmatpush1.msra.mxu0 0.0
    %253 = vmatprep.subr.mxu0 0.0
    %254 = vmatpush1.msra.mxu0 0.0
    %255 = vmatprep.subr.mxu0 0.0
    %256 = vmatpush1.msra.mxu0 0.0
    %257 = vmatprep.subr.mxu0 0.0
    %258 = vmatpush1.msra.mxu0 0.0
    %259 = vmatprep.subr.mxu0 0.0
    %260 = vmatpush1.msra.mxu0 0.0
    %261 = vmatprep.subr.mxu0 0.0
    %262 = vmatpush1.msra.mxu0 0.0
    %263 = vmatprep.subr.mxu0 0.0
    %264 = vmatpush1.msra.mxu0 0.0
    %265 = vmatprep.subr.mxu0 0.0
    %266 = vmatpush1.msra.mxu0 0.0
    %267 = vmatprep.subr.mxu0 0.0
    %268 = vmatpush1.msra.mxu0 0.0
    %269 = vmatprep.subr.mxu0 0.0
    %270 = vmatpush1.msra.mxu0 0.0
    %271 = vmatprep.subr.mxu0 0.0
    %272 = vmatpush1.msra.mxu0 0.0
    %273 = vmatprep.subr.mxu0 0.0
    %274 = vmatpush1.msra.mxu0 0.0
    %275 = vmatprep.subr.mxu0 0.0
    %276 = vmatpush1.msra.mxu0 0.0
    %277 = vmatprep.subr.mxu0 0.0
    %278 = vmatpush1.msra.mxu0 0.0
    %279 = vmatprep.subr.mxu0 0.0
    %280 = vmatpush1.msra.mxu0 0.0
    %281 = vmatprep.subr.mxu0 0.0
    %282 = vmatpush1.msra.mxu0 0.0
    %283 = vmatprep.subr.mxu0 0.0
    %284 = vmatpush1.msra.mxu0 0.0
    %285 = vmatprep.mubr.f32.mxu0 0.0
    %286 = vmatmul.mubr.f32.gmra.mrb[0].mxu0 %v66
    %v287 = vpop.f32.mrb[0].mxu0
    %v288 = vadd.f32 %v53, %v287
    %v289 = vpop.f32.mrb[0].mxu0
    %290 = vmatprep.mubr.f32.mxu0 0.0
    %291 = vmatmul.mubr.f32.gmra.mrb[0].mxu0 %v69
    %v292 = vpop.f32.mrb[0].mxu0
    %v293 = vadd.f32 %v54, %v292
    %v294 = vpop.f32.mrb[0].mxu0
    %295 = vdwg.mxu0
    %296 = vmatprep.subr.mxu0 0.0
    %297 = vmatpush1.msra.mxu0 %v29
    %298 = vmatprep.subr.mxu0 0.0
    %299 = vmatpush1.msra.mxu0 %v30
    %300 = vmatprep.subr.mxu0 0.0
    %301 = vmatpush1.msra.mxu0 %v31
    %302 = vmatprep.subr.mxu0 0.0
    %303 = vmatpush1.msra.mxu0 %v32
    %304 = vmatprep.subr.mxu0 0.0
    %305 = vmatpush1.msra.mxu0 0.0
    %306 = vmatprep.subr.mxu0 0.0
    %307 = vmatpush1.msra.mxu0 0.0
    %308 = vmatprep.subr.mxu0 0.0
    %309 = vmatpush1.msra.mxu0 0.0
    %310 = vmatprep.subr.mxu0 0.0
    %311 = vmatpush1.msra.mxu0 0.0
    %312 = vmatprep.subr.mxu0 0.0
    %313 = vmatpush1.msra.mxu0 0.0
    %314 = vmatprep.subr.mxu0 0.0
    %315 = vmatpush1.msra.mxu0 0.0
    %316 = vmatprep.subr.mxu0 0.0
    %317 = vmatpush1.msra.mxu0 0.0
    %318 = vmatprep.subr.mxu0 0.0
    %319 = vmatpush1.msra.mxu0 0.0
    %320 = vmatprep.subr.mxu0 0.0
    %321 = vmatpush1.msra.mxu0 0.0
    %322 = vmatprep.subr.mxu0 0.0
    %323 = vmatpush1.msra.mxu0 0.0
    %324 = vmatprep.subr.mxu0 0.0
    %325 = vmatpush1.msra.mxu0 0.0
    %326 = vmatprep.subr.mxu0 0.0
    %327 = vmatpush1.msra.mxu0 0.0
    %328 = vmatprep.subr.mxu0 0.0
    %329 = vmatpush1.msra.mxu0 0.0
    %330 = vmatprep.subr.mxu0 0.0
    %331 = vmatpush1.msra.mxu0 0.0
    %332 = vmatprep.subr.mxu0 0.0
    %333 = vmatpush1.msra.mxu0 0.0
    %334 = vmatprep.subr.mxu0 0.0
    %335 = vmatpush1.msra.mxu0 0.0
    %336 = vmatprep.subr.mxu0 0.0
    %337 = vmatpush1.msra.mxu0 0.0
    %338 = vmatprep.subr.mxu0 0.0
    %339 = vmatpush1.msra.mxu0 0.0
    %340 = vmatprep.subr.mxu0 0.0
    %341 = vmatpush1.msra.mxu0 0.0
    %342 = vmatprep.subr.mxu0 0.0
    %343 = vmatpush1.msra.mxu0 0.0
    %344 = vmatprep.subr.mxu0 0.0
    %345 = vmatpush1.msra.mxu0 0.0
    %346 = vmatprep.subr.mxu0 0.0
    %347 = vmatpush1.msra.mxu0 0.0
    %348 = vmatprep.subr.mxu0 0.0
    %349 = vmatpush1.msra.mxu0 0.0
    %350 = vmatprep.subr.mxu0 0.0
    %351 = vmatpush1.msra.mxu0 0.0
    %352 = vmatprep.subr.mxu0 0.0
    %353 = vmatpush1.msra.mxu0 0.0
    %354 = vmatprep.subr.mxu0 0.0
    %355 = vmatpush1.msra.mxu0 0.0
    %356 = vmatprep.subr.mxu0 0.0
    %357 = vmatpush1.msra.mxu0 0.0
    %358 = vmatprep.subr.mxu0 0.0
    %359 = vmatpush1.msra.mxu0 0.0
    %360 = vmatprep.mubr.f32.mxu0 0.0
    %361 = vmatmul.mubr.f32.gmra.mrb[0].mxu0 %v66
    %v362 = vpop.f32.mrb[0].mxu0
    %v363 = vadd.f32 %v55, %v362
    %v364 = vpop.f32.mrb[0].mxu0
    %365 = vmatprep.mubr.f32.mxu0 0.0
    %366 = vmatmul.mubr.f32.gmra.mrb[0].mxu0 %v69
    %v367 = vpop.f32.mrb[0].mxu0
    %v368 = vadd.f32 %v56, %v367
    %v369 = vpop.f32.mrb[0].mxu0
    %370 = vdwg.mxu0
    %372 = vrot.lane.b32.xlu0 %v138, 120
    %v373 = vpop.permute.xlu0 %372
    %vm374 = vcmask 64512
    %v375 = vsel %vm374, %v138, 0
    %v377 = vsel %vm374, %v373, 0
    %379 = vmatprep.subr.mxu0 0.0
    %380 = vmatpush1.xpose.msra.mxu0 %v377
    %381 = vmatprep.subr.mxu0 0.0
    %382 = vmatpush1.xpose.msra.mxu0 0.0
    %383 = vmatprep.subr.mxu0 0.0
    %384 = vmatpush1.xpose.msra.mxu0 0.0
    %385 = vmatprep.subr.mxu0 0.0
    %386 = vmatpush1.xpose.msra.mxu0 0.0
    %387 = vmatprep.subr.mxu0 0.0
    %388 = vmatpush1.xpose.msra.mxu0 0.0
    %389 = vmatprep.subr.mxu0 0.0
    %390 = vmatpush1.xpose.msra.mxu0 0.0
    %391 = vmatprep.subr.mxu0 0.0
    %392 = vmatpush1.xpose.msra.mxu0 0.0
    %393 = vmatprep.subr.mxu0 0.0
    %394 = vmatpush1.xpose.msra.mxu0 0.0
    %395 = vmatprep.subr.mxu0 0.0
    %396 = vmatpush1.xpose.msra.mxu0 0.0
    %397 = vmatprep.subr.mxu0 0.0
    %398 = vmatpush1.xpose.msra.mxu0 0.0
    %399 = vmatprep.subr.mxu0 0.0
    %400 = vmatpush1.xpose.msra.mxu0 0.0
    %401 = vmatprep.subr.mxu0 0.0
    %402 = vmatpush1.xpose.msra.mxu0 0.0
    %403 = vmatprep.subr.mxu0 0.0
    %404 = vmatpush1.xpose.msra.mxu0 0.0
    %405 = vmatprep.subr.mxu0 0.0
    %406 = vmatpush1.xpose.msra.mxu0 0.0
    %407 = vmatprep.subr.mxu0 0.0
    %408 = vmatpush1.xpose.msra.mxu0 0.0
    %409 = vmatprep.subr.mxu0 0.0
    %410 = vmatpush1.xpose.msra.mxu0 0.0
    %411 = vmatprep.subr.mxu0 0.0
    %412 = vmatpush1.xpose.msra.mxu0 0.0
    %413 = vmatprep.subr.mxu0 0.0
    %414 = vmatpush1.xpose.msra.mxu0 0.0
    %415 = vmatprep.subr.mxu0 0.0
    %416 = vmatpush1.xpose.msra.mxu0 0.0
    %417 = vmatprep.subr.mxu0 0.0
    %418 = vmatpush1.xpose.msra.mxu0 0.0
    %419 = vmatprep.subr.mxu0 0.0
    %420 = vmatpush1.xpose.msra.mxu0 0.0
    %421 = vmatprep.subr.mxu0 0.0
    %422 = vmatpush1.xpose.msra.mxu0 0.0
    %423 = vmatprep.subr.mxu0 0.0
    %424 = vmatpush1.xpose.msra.mxu0 0.0
    %425 = vmatprep.subr.mxu0 0.0
    %426 = vmatpush1.xpose.msra.mxu0 0.0
    %427 = vmatprep.subr.mxu0 0.0
    %428 = vmatpush1.xpose.msra.mxu0 0.0
    %429 = vmatprep.subr.mxu0 0.0
    %430 = vmatpush1.xpose.msra.mxu0 0.0
    %431 = vmatprep.subr.mxu0 0.0
    %432 = vmatpush1.xpose.msra.mxu0 0.0
    %433 = vmatprep.subr.mxu0 0.0
    %434 = vmatpush1.xpose.msra.mxu0 0.0
    %435 = vmatprep.subr.mxu0 0.0
    %436 = vmatpush1.xpose.msra.mxu0 0.0
    %437 = vmatprep.subr.mxu0 0.0
    %438 = vmatpush1.xpose.msra.mxu0 0.0
    %439 = vmatprep.subr.mxu0 0.0
    %440 = vmatpush1.xpose.msra.mxu0 0.0
    %441 = vmatprep.subr.mxu0 0.0
    %442 = vmatpush1.xpose.msra.mxu0 0.0
    %443 = vmatprep.mubr.f32.mxu0 0.0
    %444 = vmatmul.mubr.f32.gmra.mrb[0].mxu0 %v375
    %v445 = vpop.f32.mrb[0].mxu0
    %v446 = vadd.f32 0.0, %v445
    %v447 = vpop.f32.mrb[0].mxu0
    %448 = vdwg.mxu0
    %450 = vrot.lane.b32.xlu0 %v143, 120
    %v451 = vpop.permute.xlu0 %450
    %v452 = vsel %vm374, %v143, 0
    %v454 = vsel %vm374, %v451, 0
    %456 = vmatprep.subr.mxu0 0.0
    %457 = vmatpush1.xpose.msra.mxu0 %v454
    %458 = vmatprep.subr.mxu0 0.0
    %459 = vmatpush1.xpose.msra.mxu0 0.0
    %460 = vmatprep.subr.mxu0 0.0
    %461 = vmatpush1.xpose.msra.mxu0 0.0
    %462 = vmatprep.subr.mxu0 0.0
    %463 = vmatpush1.xpose.msra.mxu0 0.0
    %464 = vmatprep.subr.mxu0 0.0
    %465 = vmatpush1.xpose.msra.mxu0 0.0
    %466 = vmatprep.subr.mxu0 0.0
    %467 = vmatpush1.xpose.msra.mxu0 0.0
    %468 = vmatprep.subr.mxu0 0.0
    %469 = vmatpush1.xpose.msra.mxu0 0.0
    %470 = vmatprep.subr.mxu0 0.0
    %471 = vmatpush1.xpose.msra.mxu0 0.0
    %472 = vmatprep.subr.mxu0 0.0
    %473 = vmatpush1.xpose.msra.mxu0 0.0
    %474 = vmatprep.subr.mxu0 0.0
    %475 = vmatpush1.xpose.msra.mxu0 0.0
    %476 = vmatprep.subr.mxu0 0.0
    %477 = vmatpush1.xpose.msra.mxu0 0.0
    %478 = vmatprep.subr.mxu0 0.0
    %479 = vmatpush1.xpose.msra.mxu0 0.0
    %480 = vmatprep.subr.mxu0 0.0
    %481 = vmatpush1.xpose.msra.mxu0 0.0
    %482 = vmatprep.subr.mxu0 0.0
    %483 = vmatpush1.xpose.msra.mxu0 0.0
    %484 = vmatprep.subr.mxu0 0.0
    %485 = vmatpush1.xpose.msra.mxu0 0.0
    %486 = vmatprep.subr.mxu0 0.0
    %487 = vmatpush1.xpose.msra.mxu0 0.0
    %488 = vmatprep.subr.mxu0 0.0
    %489 = vmatpush1.xpose.msra.mxu0 0.0
    %490 = vmatprep.subr.mxu0 0.0
    %491 = vmatpush1.xpose.msra.mxu0 0.0
    %492 = vmatprep.subr.mxu0 0.0
    %493 = vmatpush1.xpose.msra.mxu0 0.0
    %494 = vmatprep.subr.mxu0 0.0
    %495 = vmatpush1.xpose.msra.mxu0 0.0
    %496 = vmatprep.subr.mxu0 0.0
    %497 = vmatpush1.xpose.msra.mxu0 0.0
    %498 = vmatprep.subr.mxu0 0.0
    %499 = vmatpush1.xpose.msra.mxu0 0.0
    %500 = vmatprep.subr.mxu0 0.0
    %501 = vmatpush1.xpose.msra.mxu0 0.0
    %502 = vmatprep.subr.mxu0 0.0
    %503 = vmatpush1.xpose.msra.mxu0 0.0
    %504 = vmatprep.subr.mxu0 0.0
    %505 = vmatpush1.xpose.msra.mxu0 0.0
    %506 = vmatprep.subr.mxu0 0.0
    %507 = vmatpush1.xpose.msra.mxu0 0.0
    %508 = vmatprep.subr.mxu0 0.0
    %509 = vmatpush1.xpose.msra.mxu0 0.0
    %510 = vmatprep.subr.mxu0 0.0
    %511 = vmatpush1.xpose.msra.mxu0 0.0
    %512 = vmatprep.subr.mxu0 0.0
    %513 = vmatpush1.xpose.msra.mxu0 0.0
    %514 = vmatprep.subr.mxu0 0.0
    %515 = vmatpush1.xpose.msra.mxu0 0.0
    %516 = vmatprep.subr.mxu0 0.0
    %517 = vmatpush1.xpose.msra.mxu0 0.0
    %518 = vmatprep.subr.mxu0 0.0
    %519 = vmatpush1.xpose.msra.mxu0 0.0
    %520 = vmatprep.mubr.f32.mxu0 0.0
    %521 = vmatmul.mubr.f32.gmra.mrb[0].mxu0 %v452
    %v522 = vpop.f32.mrb[0].mxu0
    %v523 = vadd.f32 0.0, %v522
    %v524 = vpop.f32.mrb[0].mxu0
    %525 = vdwg.mxu0
    %527 = vrot.lane.b32.xlu0 %v213, 120
    %v528 = vpop.permute.xlu0 %527
    %v529 = vsel %vm374, %v213, 0
    %v531 = vsel %vm374, %v528, 0
    %533 = vmatprep.subr.mxu0 0.0
    %534 = vmatpush1.xpose.msra.mxu0 %v531
    %535 = vmatprep.subr.mxu0 0.0
    %536 = vmatpush1.xpose.msra.mxu0 0.0
    %537 = vmatprep.subr.mxu0 0.0
    %538 = vmatpush1.xpose.msra.mxu0 0.0
    %539 = vmatprep.subr.mxu0 0.0
    %540 = vmatpush1.xpose.msra.mxu0 0.0
    %541 = vmatprep.subr.mxu0 0.0
    %542 = vmatpush1.xpose.msra.mxu0 0.0
    %543 = vmatprep.subr.mxu0 0.0
    %544 = vmatpush1.xpose.msra.mxu0 0.0
    %545 = vmatprep.subr.mxu0 0.0
    %546 = vmatpush1.xpose.msra.mxu0 0.0
    %547 = vmatprep.subr.mxu0 0.0
    %548 = vmatpush1.xpose.msra.mxu0 0.0
    %549 = vmatprep.subr.mxu0 0.0
    %550 = vmatpush1.xpose.msra.mxu0 0.0
    %551 = vmatprep.subr.mxu0 0.0
    %552 = vmatpush1.xpose.msra.mxu0 0.0
    %553 = vmatprep.subr.mxu0 0.0
    %554 = vmatpush1.xpose.msra.mxu0 0.0
    %555 = vmatprep.subr.mxu0 0.0
    %556 = vmatpush1.xpose.msra.mxu0 0.0
    %557 = vmatprep.subr.mxu0 0.0
    %558 = vmatpush1.xpose.msra.mxu0 0.0
    %559 = vmatprep.subr.mxu0 0.0
    %560 = vmatpush1.xpose.msra.mxu0 0.0
    %561 = vmatprep.subr.mxu0 0.0
    %562 = vmatpush1.xpose.msra.mxu0 0.0
    %563 = vmatprep.subr.mxu0 0.0
    %564 = vmatpush1.xpose.msra.mxu0 0.0
    %565 = vmatprep.subr.mxu0 0.0
    %566 = vmatpush1.xpose.msra.mxu0 0.0
    %567 = vmatprep.subr.mxu0 0.0
    %568 = vmatpush1.xpose.msra.mxu0 0.0
    %569 = vmatprep.subr.mxu0 0.0
    %570 = vmatpush1.xpose.msra.mxu0 0.0
    %571 = vmatprep.subr.mxu0 0.0
    %572 = vmatpush1.xpose.msra.mxu0 0.0
    %573 = vmatprep.subr.mxu0 0.0
    %574 = vmatpush1.xpose.msra.mxu0 0.0
    %575 = vmatprep.subr.mxu0 0.0
    %576 = vmatpush1.xpose.msra.mxu0 0.0
    %577 = vmatprep.subr.mxu0 0.0
    %578 = vmatpush1.xpose.msra.mxu0 0.0
    %579 = vmatprep.subr.mxu0 0.0
    %580 = vmatpush1.xpose.msra.mxu0 0.0
    %581 = vmatprep.subr.mxu0 0.0
    %582 = vmatpush1.xpose.msra.mxu0 0.0
    %583 = vmatprep.subr.mxu0 0.0
    %584 = vmatpush1.xpose.msra.mxu0 0.0
    %585 = vmatprep.subr.mxu0 0.0
    %586 = vmatpush1.xpose.msra.mxu0 0.0
    %587 = vmatprep.subr.mxu0 0.0
    %588 = vmatpush1.xpose.msra.mxu0 0.0
    %589 = vmatprep.subr.mxu0 0.0
    %590 = vmatpush1.xpose.msra.mxu0 0.0
    %591 = vmatprep.subr.mxu0 0.0
    %592 = vmatpush1.xpose.msra.mxu0 0.0
    %593 = vmatprep.subr.mxu0 0.0
    %594 = vmatpush1.xpose.msra.mxu0 0.0
    %595 = vmatprep.subr.mxu0 0.0
    %596 = vmatpush1.xpose.msra.mxu0 0.0
    %597 = vmatprep.mubr.f32.mxu0 0.0
    %598 = vmatmul.mubr.f32.gmra.mrb[0].mxu0 %v529
    %v599 = vpop.f32.mrb[0].mxu0
    %v600 = vadd.f32 0.0, %v599
    %v601 = vpop.f32.mrb[0].mxu0
    %602 = vdwg.mxu0
    %604 = vrot.lane.b32.xlu0 %v218, 120
    %v605 = vpop.permute.xlu0 %604
    %v606 = vsel %vm374, %v218, 0
    %v608 = vsel %vm374, %v605, 0
    %610 = vmatprep.subr.mxu0 0.0
    %611 = vmatpush1.xpose.msra.mxu0 %v608
    %612 = vmatprep.subr.mxu0 0.0
    %613 = vmatpush1.xpose.msra.mxu0 0.0
    %614 = vmatprep.subr.mxu0 0.0
    %615 = vmatpush1.xpose.msra.mxu0 0.0
    %616 = vmatprep.subr.mxu0 0.0
    %617 = vmatpush1.xpose.msra.mxu0 0.0
    %618 = vmatprep.subr.mxu0 0.0
    %619 = vmatpush1.xpose.msra.mxu0 0.0
    %620 = vmatprep.subr.mxu0 0.0
    %621 = vmatpush1.xpose.msra.mxu0 0.0
    %622 = vmatprep.subr.mxu0 0.0
    %623 = vmatpush1.xpose.msra.mxu0 0.0
    %624 = vmatprep.subr.mxu0 0.0
    %625 = vmatpush1.xpose.msra.mxu0 0.0
    %626 = vmatprep.subr.mxu0 0.0
    %627 = vmatpush1.xpose.msra.mxu0 0.0
    %628 = vmatprep.subr.mxu0 0.0
    %629 = vmatpush1.xpose.msra.mxu0 0.0
    %630 = vmatprep.subr.mxu0 0.0
    %631 = vmatpush1.xpose.msra.mxu0 0.0
    %632 = vmatprep.subr.mxu0 0.0
    %633 = vmatpush1.xpose.msra.mxu0 0.0
    %634 = vmatprep.subr.mxu0 0.0
    %635 = vmatpush1.xpose.msra.mxu0 0.0
    %636 = vmatprep.subr.mxu0 0.0
    %637 = vmatpush1.xpose.msra.mxu0 0.0
    %638 = vmatprep.subr.mxu0 0.0
    %639 = vmatpush1.xpose.msra.mxu0 0.0
    %640 = vmatprep.subr.mxu0 0.0
    %641 = vmatpush1.xpose.msra.mxu0 0.0
    %642 = vmatprep.subr.mxu0 0.0
    %643 = vmatpush1.xpose.msra.mxu0 0.0
    %644 = vmatprep.subr.mxu0 0.0
    %645 = vmatpush1.xpose.msra.mxu0 0.0
    %646 = vmatprep.subr.mxu0 0.0
    %647 = vmatpush1.xpose.msra.mxu0 0.0
    %648 = vmatprep.subr.mxu0 0.0
    %649 = vmatpush1.xpose.msra.mxu0 0.0
    %650 = vmatprep.subr.mxu0 0.0
    %651 = vmatpush1.xpose.msra.mxu0 0.0
    %652 = vmatprep.subr.mxu0 0.0
    %653 = vmatpush1.xpose.msra.mxu0 0.0
    %654 = vmatprep.subr.mxu0 0.0
    %655 = vmatpush1.xpose.msra.mxu0 0.0
    %656 = vmatprep.subr.mxu0 0.0
    %657 = vmatpush1.xpose.msra.mxu0 0.0
    %658 = vmatprep.subr.mxu0 0.0
    %659 = vmatpush1.xpose.msra.mxu0 0.0
    %660 = vmatprep.subr.mxu0 0.0
    %661 = vmatpush1.xpose.msra.mxu0 0.0
    %662 = vmatprep.subr.mxu0 0.0
    %663 = vmatpush1.xpose.msra.mxu0 0.0
    %664 = vmatprep.subr.mxu0 0.0
    %665 = vmatpush1.xpose.msra.mxu0 0.0
    %666 = vmatprep.subr.mxu0 0.0
    %667 = vmatpush1.xpose.msra.mxu0 0.0
    %668 = vmatprep.subr.mxu0 0.0
    %669 = vmatpush1.xpose.msra.mxu0 0.0
    %670 = vmatprep.subr.mxu0 0.0
    %671 = vmatpush1.xpose.msra.mxu0 0.0
    %672 = vmatprep.subr.mxu0 0.0
    %673 = vmatpush1.xpose.msra.mxu0 0.0
    %674 = vmatprep.mubr.f32.mxu0 0.0
    %675 = vmatmul.mubr.f32.gmra.mrb[0].mxu0 %v606
    %v676 = vpop.f32.mrb[0].mxu0
    %v677 = vadd.f32 0.0, %v676
    %v678 = vpop.f32.mrb[0].mxu0
    %679 = vdwg.mxu0
    %681 = vrot.lane.b32.xlu0 %v288, 120
    %v682 = vpop.permute.xlu0 %681
    %v683 = vsel %vm374, %v288, 0
    %v685 = vsel %vm374, %v682, 0
    %687 = vmatprep.subr.mxu0 0.0
    %688 = vmatpush1.xpose.msra.mxu0 %v685
    %689 = vmatprep.subr.mxu0 0.0
    %690 = vmatpush1.xpose.msra.mxu0 0.0
    %691 = vmatprep.subr.mxu0 0.0
    %692 = vmatpush1.xpose.msra.mxu0 0.0
    %693 = vmatprep.subr.mxu0 0.0
    %694 = vmatpush1.xpose.msra.mxu0 0.0
    %695 = vmatprep.subr.mxu0 0.0
    %696 = vmatpush1.xpose.msra.mxu0 0.0
    %697 = vmatprep.subr.mxu0 0.0
    %698 = vmatpush1.xpose.msra.mxu0 0.0
    %699 = vmatprep.subr.mxu0 0.0
    %700 = vmatpush1.xpose.msra.mxu0 0.0
    %701 = vmatprep.subr.mxu0 0.0
    %702 = vmatpush1.xpose.msra.mxu0 0.0
    %703 = vmatprep.subr.mxu0 0.0
    %704 = vmatpush1.xpose.msra.mxu0 0.0
    %705 = vmatprep.subr.mxu0 0.0
    %706 = vmatpush1.xpose.msra.mxu0 0.0
    %707 = vmatprep.subr.mxu0 0.0
    %708 = vmatpush1.xpose.msra.mxu0 0.0
    %709 = vmatprep.subr.mxu0 0.0
    %710 = vmatpush1.xpose.msra.mxu0 0.0
    %711 = vmatprep.subr.mxu0 0.0
    %712 = vmatpush1.xpose.msra.mxu0 0.0
    %713 = vmatprep.subr.mxu0 0.0
    %714 = vmatpush1.xpose.msra.mxu0 0.0
    %715 = vmatprep.subr.mxu0 0.0
    %716 = vmatpush1.xpose.msra.mxu0 0.0
    %717 = vmatprep.subr.mxu0 0.0
    %718 = vmatpush1.xpose.msra.mxu0 0.0
    %719 = vmatprep.subr.mxu0 0.0
    %720 = vmatpush1.xpose.msra.mxu0 0.0
    %721 = vmatprep.subr.mxu0 0.0
    %722 = vmatpush1.xpose.msra.mxu0 0.0
    %723 = vmatprep.subr.mxu0 0.0
    %724 = vmatpush1.xpose.msra.mxu0 0.0
    %725 = vmatprep.subr.mxu0 0.0
    %726 = vmatpush1.xpose.msra.mxu0 0.0
    %727 = vmatprep.subr.mxu0 0.0
    %728 = vmatpush1.xpose.msra.mxu0 0.0
    %729 = vmatprep.subr.mxu0 0.0
    %730 = vmatpush1.xpose.msra.mxu0 0.0
    %731 = vmatprep.subr.mxu0 0.0
    %732 = vmatpush1.xpose.msra.mxu0 0.0
    %733 = vmatprep.subr.mxu0 0.0
    %734 = vmatpush1.xpose.msra.mxu0 0.0
    %735 = vmatprep.subr.mxu0 0.0
    %736 = vmatpush1.xpose.msra.mxu0 0.0
    %737 = vmatprep.subr.mxu0 0.0
    %738 = vmatpush1.xpose.msra.mxu0 0.0
    %739 = vmatprep.subr.mxu0 0.0
    %740 = vmatpush1.xpose.msra.mxu0 0.0
    %741 = vmatprep.subr.mxu0 0.0
    %742 = vmatpush1.xpose.msra.mxu0 0.0
    %743 = vmatprep.subr.mxu0 0.0
    %744 = vmatpush1.xpose.msra.mxu0 0.0
    %745 = vmatprep.subr.mxu0 0.0
    %746 = vmatpush1.xpose.msra.mxu0 0.0
    %747 = vmatprep.subr.mxu0 0.0
    %748 = vmatpush1.xpose.msra.mxu0 0.0
    %749 = vmatprep.subr.mxu0 0.0
    %750 = vmatpush1.xpose.msra.mxu0 0.0
    %751 = vmatprep.mubr.f32.mxu0 0.0
    %752 = vmatmul.mubr.f32.gmra.mrb[0].mxu0 %v683
    %v753 = vpop.f32.mrb[0].mxu0
    %v754 = vadd.f32 0.0, %v753
    %v755 = vpop.f32.mrb[0].mxu0
    %756 = vdwg.mxu0
    %758 = vrot.lane.b32.xlu0 %v293, 120
    %v759 = vpop.permute.xlu0 %758
    %v760 = vsel %vm374, %v293, 0
    %v762 = vsel %vm374, %v759, 0
    %764 = vmatprep.subr.mxu0 0.0
    %765 = vmatpush1.xpose.msra.mxu0 %v762
    %766 = vmatprep.subr.mxu0 0.0
    %767 = vmatpush1.xpose.msra.mxu0 0.0
    %768 = vmatprep.subr.mxu0 0.0
    %769 = vmatpush1.xpose.msra.mxu0 0.0
    %770 = vmatprep.subr.mxu0 0.0
    %771 = vmatpush1.xpose.msra.mxu0 0.0
    %772 = vmatprep.subr.mxu0 0.0
    %773 = vmatpush1.xpose.msra.mxu0 0.0
    %774 = vmatprep.subr.mxu0 0.0
    %775 = vmatpush1.xpose.msra.mxu0 0.0
    %776 = vmatprep.subr.mxu0 0.0
    %777 = vmatpush1.xpose.msra.mxu0 0.0
    %778 = vmatprep.subr.mxu0 0.0
    %779 = vmatpush1.xpose.msra.mxu0 0.0
    %780 = vmatprep.subr.mxu0 0.0
    %781 = vmatpush1.xpose.msra.mxu0 0.0
    %782 = vmatprep.subr.mxu0 0.0
    %783 = vmatpush1.xpose.msra.mxu0 0.0
    %784 = vmatprep.subr.mxu0 0.0
    %785 = vmatpush1.xpose.msra.mxu0 0.0
    %786 = vmatprep.subr.mxu0 0.0
    %787 = vmatpush1.xpose.msra.mxu0 0.0
    %788 = vmatprep.subr.mxu0 0.0
    %789 = vmatpush1.xpose.msra.mxu0 0.0
    %790 = vmatprep.subr.mxu0 0.0
    %791 = vmatpush1.xpose.msra.mxu0 0.0
    %792 = vmatprep.subr.mxu0 0.0
    %793 = vmatpush1.xpose.msra.mxu0 0.0
    %794 = vmatprep.subr.mxu0 0.0
    %795 = vmatpush1.xpose.msra.mxu0 0.0
    %796 = vmatprep.subr.mxu0 0.0
    %797 = vmatpush1.xpose.msra.mxu0 0.0
    %798 = vmatprep.subr.mxu0 0.0
    %799 = vmatpush1.xpose.msra.mxu0 0.0
    %800 = vmatprep.subr.mxu0 0.0
    %801 = vmatpush1.xpose.msra.mxu0 0.0
    %802 = vmatprep.subr.mxu0 0.0
    %803 = vmatpush1.xpose.msra.mxu0 0.0
    %804 = vmatprep.subr.mxu0 0.0
    %805 = vmatpush1.xpose.msra.mxu0 0.0
    %806 = vmatprep.subr.mxu0 0.0
    %807 = vmatpush1.xpose.msra.mxu0 0.0
    %808 = vmatprep.subr.mxu0 0.0
    %809 = vmatpush1.xpose.msra.mxu0 0.0
    %810 = vmatprep.subr.mxu0 0.0
    %811 = vmatpush1.xpose.msra.mxu0 0.0
    %812 = vmatprep.subr.mxu0 0.0
    %813 = vmatpush1.xpose.msra.mxu0 0.0
    %814 = vmatprep.subr.mxu0 0.0
    %815 = vmatpush1.xpose.msra.mxu0 0.0
    %816 = vmatprep.subr.mxu0 0.0
    %817 = vmatpush1.xpose.msra.mxu0 0.0
    %818 = vmatprep.subr.mxu0 0.0
    %819 = vmatpush1.xpose.msra.mxu0 0.0
    %820 = vmatprep.subr.mxu0 0.0
    %821 = vmatpush1.xpose.msra.mxu0 0.0
    %822 = vmatprep.subr.mxu0 0.0
    %823 = vmatpush1.xpose.msra.mxu0 0.0
    %824 = vmatprep.subr.mxu0 0.0
    %825 = vmatpush1.xpose.msra.mxu0 0.0
    %826 = vmatprep.subr.mxu0 0.0
    %827 = vmatpush1.xpose.msra.mxu0 0.0
    %828 = vmatprep.mubr.f32.mxu0 0.0
    %829 = vmatmul.mubr.f32.gmra.mrb[0].mxu0 %v760
    %v830 = vpop.f32.mrb[0].mxu0
    %v831 = vadd.f32 0.0, %v830
    %v832 = vpop.f32.mrb[0].mxu0
    %833 = vdwg.mxu0
    %835 = vrot.lane.b32.xlu0 %v363, 120
    %v836 = vpop.permute.xlu0 %835
    %v837 = vsel %vm374, %v363, 0
    %v839 = vsel %vm374, %v836, 0
    %841 = vmatprep.subr.mxu0 0.0
    %842 = vmatpush1.xpose.msra.mxu0 %v839
    %843 = vmatprep.subr.mxu0 0.0
    %844 = vmatpush1.xpose.msra.mxu0 0.0
    %845 = vmatprep.subr.mxu0 0.0
    %846 = vmatpush1.xpose.msra.mxu0 0.0
    %847 = vmatprep.subr.mxu0 0.0
    %848 = vmatpush1.xpose.msra.mxu0 0.0
    %849 = vmatprep.subr.mxu0 0.0
    %850 = vmatpush1.xpose.msra.mxu0 0.0
    %851 = vmatprep.subr.mxu0 0.0
    %852 = vmatpush1.xpose.msra.mxu0 0.0
    %853 = vmatprep.subr.mxu0 0.0
    %854 = vmatpush1.xpose.msra.mxu0 0.0
    %855 = vmatprep.subr.mxu0 0.0
    %856 = vmatpush1.xpose.msra.mxu0 0.0
    %857 = vmatprep.subr.mxu0 0.0
    %858 = vmatpush1.xpose.msra.mxu0 0.0
    %859 = vmatprep.subr.mxu0 0.0
    %860 = vmatpush1.xpose.msra.mxu0 0.0
    %861 = vmatprep.subr.mxu0 0.0
    %862 = vmatpush1.xpose.msra.mxu0 0.0
    %863 = vmatprep.subr.mxu0 0.0
    %864 = vmatpush1.xpose.msra.mxu0 0.0
    %865 = vmatprep.subr.mxu0 0.0
    %866 = vmatpush1.xpose.msra.mxu0 0.0
    %867 = vmatprep.subr.mxu0 0.0
    %868 = vmatpush1.xpose.msra.mxu0 0.0
    %869 = vmatprep.subr.mxu0 0.0
    %870 = vmatpush1.xpose.msra.mxu0 0.0
    %871 = vmatprep.subr.mxu0 0.0
    %872 = vmatpush1.xpose.msra.mxu0 0.0
    %873 = vmatprep.subr.mxu0 0.0
    %874 = vmatpush1.xpose.msra.mxu0 0.0
    %875 = vmatprep.subr.mxu0 0.0
    %876 = vmatpush1.xpose.msra.mxu0 0.0
    %877 = vmatprep.subr.mxu0 0.0
    %878 = vmatpush1.xpose.msra.mxu0 0.0
    %879 = vmatprep.subr.mxu0 0.0
    %880 = vmatpush1.xpose.msra.mxu0 0.0
    %881 = vmatprep.subr.mxu0 0.0
    %882 = vmatpush1.xpose.msra.mxu0 0.0
    %883 = vmatprep.subr.mxu0 0.0
    %884 = vmatpush1.xpose.msra.mxu0 0.0
    %885 = vmatprep.subr.mxu0 0.0
    %886 = vmatpush1.xpose.msra.mxu0 0.0
    %887 = vmatprep.subr.mxu0 0.0
    %888 = vmatpush1.xpose.msra.mxu0 0.0
    %889 = vmatprep.subr.mxu0 0.0
    %890 = vmatpush1.xpose.msra.mxu0 0.0
    %891 = vmatprep.subr.mxu0 0.0
    %892 = vmatpush1.xpose.msra.mxu0 0.0
    %893 = vmatprep.subr.mxu0 0.0
    %894 = vmatpush1.xpose.msra.mxu0 0.0
    %895 = vmatprep.subr.mxu0 0.0
    %896 = vmatpush1.xpose.msra.mxu0 0.0
    %897 = vmatprep.subr.mxu0 0.0
    %898 = vmatpush1.xpose.msra.mxu0 0.0
    %899 = vmatprep.subr.mxu0 0.0
    %900 = vmatpush1.xpose.msra.mxu0 0.0
    %901 = vmatprep.subr.mxu0 0.0
    %902 = vmatpush1.xpose.msra.mxu0 0.0
    %903 = vmatprep.subr.mxu0 0.0
    %904 = vmatpush1.xpose.msra.mxu0 0.0
    %905 = vmatprep.mubr.f32.mxu0 0.0
    %906 = vmatmul.mubr.f32.gmra.mrb[0].mxu0 %v837
    %v907 = vpop.f32.mrb[0].mxu0
    %v908 = vadd.f32 0.0, %v907
    %v909 = vpop.f32.mrb[0].mxu0
    %910 = vdwg.mxu0
    %912 = vrot.lane.b32.xlu0 %v368, 120
    %v913 = vpop.permute.xlu0 %912
    %v914 = vsel %vm374, %v368, 0
    %v916 = vsel %vm374, %v913, 0
    %918 = vmatprep.subr.mxu0 0.0
    %919 = vmatpush1.xpose.msra.mxu0 %v916
    %920 = vmatprep.subr.mxu0 0.0
    %921 = vmatpush1.xpose.msra.mxu0 0.0
    %922 = vmatprep.subr.mxu0 0.0
    %923 = vmatpush1.xpose.msra.mxu0 0.0
    %924 = vmatprep.subr.mxu0 0.0
    %925 = vmatpush1.xpose.msra.mxu0 0.0
    %926 = vmatprep.subr.mxu0 0.0
    %927 = vmatpush1.xpose.msra.mxu0 0.0
    %928 = vmatprep.subr.mxu0 0.0
    %929 = vmatpush1.xpose.msra.mxu0 0.0
    %930 = vmatprep.subr.mxu0 0.0
    %931 = vmatpush1.xpose.msra.mxu0 0.0
    %932 = vmatprep.subr.mxu0 0.0
    %933 = vmatpush1.xpose.msra.mxu0 0.0
    %934 = vmatprep.subr.mxu0 0.0
    %935 = vmatpush1.xpose.msra.mxu0 0.0
    %936 = vmatprep.subr.mxu0 0.0
    %937 = vmatpush1.xpose.msra.mxu0 0.0
    %938 = vmatprep.subr.mxu0 0.0
    %939 = vmatpush1.xpose.msra.mxu0 0.0
    %940 = vmatprep.subr.mxu0 0.0
    %941 = vmatpush1.xpose.msra.mxu0 0.0
    %942 = vmatprep.subr.mxu0 0.0
    %943 = vmatpush1.xpose.msra.mxu0 0.0
    %944 = vmatprep.subr.mxu0 0.0
    %945 = vmatpush1.xpose.msra.mxu0 0.0
    %946 = vmatprep.subr.mxu0 0.0
    %947 = vmatpush1.xpose.msra.mxu0 0.0
    %948 = vmatprep.subr.mxu0 0.0
    %949 = vmatpush1.xpose.msra.mxu0 0.0
    %950 = vmatprep.subr.mxu0 0.0
    %951 = vmatpush1.xpose.msra.mxu0 0.0
    %952 = vmatprep.subr.mxu0 0.0
    %953 = vmatpush1.xpose.msra.mxu0 0.0
    %954 = vmatprep.subr.mxu0 0.0
    %955 = vmatpush1.xpose.msra.mxu0 0.0
    %956 = vmatprep.subr.mxu0 0.0
    %957 = vmatpush1.xpose.msra.mxu0 0.0
    %958 = vmatprep.subr.mxu0 0.0
    %959 = vmatpush1.xpose.msra.mxu0 0.0
    %960 = vmatprep.subr.mxu0 0.0
    %961 = vmatpush1.xpose.msra.mxu0 0.0
    %962 = vmatprep.subr.mxu0 0.0
    %963 = vmatpush1.xpose.msra.mxu0 0.0
    %964 = vmatprep.subr.mxu0 0.0
    %965 = vmatpush1.xpose.msra.mxu0 0.0
    %966 = vmatprep.subr.mxu0 0.0
    %967 = vmatpush1.xpose.msra.mxu0 0.0
    %968 = vmatprep.subr.mxu0 0.0
    %969 = vmatpush1.xpose.msra.mxu0 0.0
    %970 = vmatprep.subr.mxu0 0.0
    %971 = vmatpush1.xpose.msra.mxu0 0.0
    %972 = vmatprep.subr.mxu0 0.0
    %973 = vmatpush1.xpose.msra.mxu0 0.0
    %974 = vmatprep.subr.mxu0 0.0
    %975 = vmatpush1.xpose.msra.mxu0 0.0
    %976 = vmatprep.subr.mxu0 0.0
    %977 = vmatpush1.xpose.msra.mxu0 0.0
    %978 = vmatprep.subr.mxu0 0.0
    %979 = vmatpush1.xpose.msra.mxu0 0.0
    %980 = vmatprep.subr.mxu0 0.0
    %981 = vmatpush1.xpose.msra.mxu0 0.0
    %982 = vmatprep.mubr.f32.mxu0 0.0
    %983 = vmatmul.mubr.f32.gmra.mrb[0].mxu0 %v914
    %v984 = vpop.f32.mrb[0].mxu0
    %v985 = vadd.f32 0.0, %v984
    %v986 = vpop.f32.mrb[0].mxu0
    %987 = vdwg.mxu0
    %v988 = vsel %vm374, %v446, -inf
    %989 = vmax.xlane.f32.xlu0 %v988
    %v990 = vpop.xlane.xlu0 %989
    %v991 = vsel %vm374, %v523, -inf
    %992 = vmax.xlane.f32.xlu0 %v991
    %v993 = vpop.xlane.xlu0 %992
    %v994 = vsel %vm374, %v600, -inf
    %995 = vmax.xlane.f32.xlu0 %v994
    %v996 = vpop.xlane.xlu0 %995
    %v997 = vsel %vm374, %v677, -inf
    %998 = vmax.xlane.f32.xlu0 %v997
    %v999 = vpop.xlane.xlu0 %998
    %v1000 = vsel %vm374, %v754, -inf
    %1001 = vmax.xlane.f32.xlu0 %v1000
    %v1002 = vpop.xlane.xlu0 %1001
    %v1003 = vsel %vm374, %v831, -inf
    %1004 = vmax.xlane.f32.xlu0 %v1003
    %v1005 = vpop.xlane.xlu0 %1004
    %v1006 = vsel %vm374, %v908, -inf
    %1007 = vmax.xlane.f32.xlu0 %v1006
    %v1008 = vpop.xlane.xlu0 %1007
    %v1009 = vsel %vm374, %v985, -inf
    %1010 = vmax.xlane.f32.xlu0 %v1009
    %v1011 = vpop.xlane.xlu0 %1010
    %v1012 = vsub.f32 %v446, %v990
    %v1013 = vsub.f32 %v523, %v993
    %v1014 = vsub.f32 %v600, %v996
    %v1015 = vsub.f32 %v677, %v999
    %v1016 = vsub.f32 %v754, %v1002
    %v1017 = vsub.f32 %v831, %v1005
    %v1018 = vsub.f32 %v908, %v1008
    %v1019 = vsub.f32 %v985, %v1011
    %v1020 = vmul.f32 %v1012, 1.442695
    %v1021 = vpow.pop %v1020
    %v1022 = vmul.f32 %v1013, 1.442695
    %v1023 = vpow.pop %v1022
    %v1024 = vmul.f32 %v1014, 1.442695
    %v1025 = vpow.pop %v1024
    %v1026 = vmul.f32 %v1015, 1.442695
    %v1027 = vpow.pop %v1026
    %v1028 = vmul.f32 %v1016, 1.442695
    %v1029 = vpow.pop %v1028
    %v1030 = vmul.f32 %v1017, 1.442695
    %v1031 = vpow.pop %v1030
    %v1032 = vmul.f32 %v1018, 1.442695
    %v1033 = vpow.pop %v1032
    %v1034 = vmul.f32 %v1019, 1.442695
    %v1035 = vpow.pop %v1034
    %v1036 = vsel %vm374, %v1021, 0.0
    %1037 = vadd.xlane.f32.xlu0 %v1036
    %v1038 = vpop.xlane.xlu0 %1037
    %v1039 = vsel %vm374, %v1023, 0.0
    %1040 = vadd.xlane.f32.xlu0 %v1039
    %v1041 = vpop.xlane.xlu0 %1040
    %v1042 = vsel %vm374, %v1025, 0.0
    %1043 = vadd.xlane.f32.xlu0 %v1042
    %v1044 = vpop.xlane.xlu0 %1043
    %v1045 = vsel %vm374, %v1027, 0.0
    %1046 = vadd.xlane.f32.xlu0 %v1045
    %v1047 = vpop.xlane.xlu0 %1046
    %v1048 = vsel %vm374, %v1029, 0.0
    %1049 = vadd.xlane.f32.xlu0 %v1048
    %v1050 = vpop.xlane.xlu0 %1049
    %v1051 = vsel %vm374, %v1031, 0.0
    %1052 = vadd.xlane.f32.xlu0 %v1051
    %v1053 = vpop.xlane.xlu0 %1052
    %v1054 = vsel %vm374, %v1033, 0.0
    %1055 = vadd.xlane.f32.xlu0 %v1054
    %v1056 = vpop.xlane.xlu0 %1055
    %v1057 = vsel %vm374, %v1035, 0.0
    %1058 = vadd.xlane.f32.xlu0 %v1057
    %v1059 = vpop.xlane.xlu0 %1058
    %v1060 = vrcp.pop %v1038
    %v1061 = vrcp.pop %v1041
    %v1062 = vrcp.pop %v1044
    %v1063 = vrcp.pop %v1047
    %v1064 = vrcp.pop %v1050
    %v1065 = vrcp.pop %v1053
    %v1066 = vrcp.pop %v1056
    %v1067 = vrcp.pop %v1059
    %v1068 = vmul.f32 %v1021, %v1060
    %v1069 = vmul.f32 %v1023, %v1061
    %v1070 = vmul.f32 %v1025, %v1062
    %v1071 = vmul.f32 %v1027, %v1063
    %v1072 = vmul.f32 %v1029, %v1064
    %v1073 = vmul.f32 %v1031, %v1065
    %v1074 = vmul.f32 %v1033, %v1066
    %v1075 = vmul.f32 %v1035, %v1067
    %1076 = vrot.lane.b32.xlu0 %v138, 112
    %v1077 = vpop.permute.xlu0 %1076
    %v1080 = vsel %vm374, %v1068, 0
    %1082 = vmatprep.subr.mxu0 0.0
    %1083 = vmatpush1.msra.mxu0 %v1077
    %1084 = vmatprep.subr.mxu0 0.0
    %1085 = vmatpush1.msra.mxu0 0.0
    %1086 = vmatprep.subr.mxu0 0.0
    %1087 = vmatpush1.msra.mxu0 0.0
    %1088 = vmatprep.subr.mxu0 0.0
    %1089 = vmatpush1.msra.mxu0 0.0
    %1090 = vmatprep.subr.mxu0 0.0
    %1091 = vmatpush1.msra.mxu0 0.0
    %1092 = vmatprep.subr.mxu0 0.0
    %1093 = vmatpush1.msra.mxu0 0.0
    %1094 = vmatprep.subr.mxu0 0.0
    %1095 = vmatpush1.msra.mxu0 0.0
    %1096 = vmatprep.subr.mxu0 0.0
    %1097 = vmatpush1.msra.mxu0 0.0
    %1098 = vmatprep.subr.mxu0 0.0
    %1099 = vmatpush1.msra.mxu0 0.0
    %1100 = vmatprep.subr.mxu0 0.0
    %1101 = vmatpush1.msra.mxu0 0.0
    %1102 = vmatprep.subr.mxu0 0.0
    %1103 = vmatpush1.msra.mxu0 0.0
    %1104 = vmatprep.subr.mxu0 0.0
    %1105 = vmatpush1.msra.mxu0 0.0
    %1106 = vmatprep.subr.mxu0 0.0
    %1107 = vmatpush1.msra.mxu0 0.0
    %1108 = vmatprep.subr.mxu0 0.0
    %1109 = vmatpush1.msra.mxu0 0.0
    %1110 = vmatprep.subr.mxu0 0.0
    %1111 = vmatpush1.msra.mxu0 0.0
    %1112 = vmatprep.subr.mxu0 0.0
    %1113 = vmatpush1.msra.mxu0 0.0
    %1114 = vmatprep.subr.mxu0 0.0
    %1115 = vmatpush1.msra.mxu0 0.0
    %1116 = vmatprep.subr.mxu0 0.0
    %1117 = vmatpush1.msra.mxu0 0.0
    %1118 = vmatprep.subr.mxu0 0.0
    %1119 = vmatpush1.msra.mxu0 0.0
    %1120 = vmatprep.subr.mxu0 0.0
    %1121 = vmatpush1.msra.mxu0 0.0
    %1122 = vmatprep.subr.mxu0 0.0
    %1123 = vmatpush1.msra.mxu0 0.0
    %1124 = vmatprep.subr.mxu0 0.0
    %1125 = vmatpush1.msra.mxu0 0.0
    %1126 = vmatprep.subr.mxu0 0.0
    %1127 = vmatpush1.msra.mxu0 0.0
    %1128 = vmatprep.subr.mxu0 0.0
    %1129 = vmatpush1.msra.mxu0 0.0
    %1130 = vmatprep.subr.mxu0 0.0
    %1131 = vmatpush1.msra.mxu0 0.0
    %1132 = vmatprep.subr.mxu0 0.0
    %1133 = vmatpush1.msra.mxu0 0.0
    %1134 = vmatprep.subr.mxu0 0.0
    %1135 = vmatpush1.msra.mxu0 0.0
    %1136 = vmatprep.subr.mxu0 0.0
    %1137 = vmatpush1.msra.mxu0 0.0
    %1138 = vmatprep.subr.mxu0 0.0
    %1139 = vmatpush1.msra.mxu0 0.0
    %1140 = vmatprep.subr.mxu0 0.0
    %1141 = vmatpush1.msra.mxu0 0.0
    %1142 = vmatprep.subr.mxu0 0.0
    %1143 = vmatpush1.msra.mxu0 0.0
    %1144 = vmatprep.subr.mxu0 0.0
    %1145 = vmatpush1.msra.mxu0 0.0
    %1146 = vmatprep.mubr.f32.mxu0 0.0
    %1147 = vmatmul.mubr.f32.gmra.mrb[0].mxu0 %v1080
    %v1148 = vpop.f32.mrb[0].mxu0
    %v1149 = vadd.f32 0.0, %v1148
    %v1150 = vpop.f32.mrb[0].mxu0
    %1151 = vdwg.mxu0
    %1152 = vrot.lane.b32.xlu0 %v143, 112
    %v1153 = vpop.permute.xlu0 %1152
    %v1156 = vsel %vm374, %v1069, 0
    %1158 = vmatprep.subr.mxu0 0.0
    %1159 = vmatpush1.msra.mxu0 %v1153
    %1160 = vmatprep.subr.mxu0 0.0
    %1161 = vmatpush1.msra.mxu0 0.0
    %1162 = vmatprep.subr.mxu0 0.0
    %1163 = vmatpush1.msra.mxu0 0.0
    %1164 = vmatprep.subr.mxu0 0.0
    %1165 = vmatpush1.msra.mxu0 0.0
    %1166 = vmatprep.subr.mxu0 0.0
    %1167 = vmatpush1.msra.mxu0 0.0
    %1168 = vmatprep.subr.mxu0 0.0
    %1169 = vmatpush1.msra.mxu0 0.0
    %1170 = vmatprep.subr.mxu0 0.0
    %1171 = vmatpush1.msra.mxu0 0.0
    %1172 = vmatprep.subr.mxu0 0.0
    %1173 = vmatpush1.msra.mxu0 0.0
    %1174 = vmatprep.subr.mxu0 0.0
    %1175 = vmatpush1.msra.mxu0 0.0
    %1176 = vmatprep.subr.mxu0 0.0
    %1177 = vmatpush1.msra.mxu0 0.0
    %1178 = vmatprep.subr.mxu0 0.0
    %1179 = vmatpush1.msra.mxu0 0.0
    %1180 = vmatprep.subr.mxu0 0.0
    %1181 = vmatpush1.msra.mxu0 0.0
    %1182 = vmatprep.subr.mxu0 0.0
    %1183 = vmatpush1.msra.mxu0 0.0
    %1184 = vmatprep.subr.mxu0 0.0
    %1185 = vmatpush1.msra.mxu0 0.0
    %1186 = vmatprep.subr.mxu0 0.0
    %1187 = vmatpush1.msra.mxu0 0.0
    %1188 = vmatprep.subr.mxu0 0.0
    %1189 = vmatpush1.msra.mxu0 0.0
    %1190 = vmatprep.subr.mxu0 0.0
    %1191 = vmatpush1.msra.mxu0 0.0
    %1192 = vmatprep.subr.mxu0 0.0
    %1193 = vmatpush1.msra.mxu0 0.0
    %1194 = vmatprep.subr.mxu0 0.0
    %1195 = vmatpush1.msra.mxu0 0.0
    %1196 = vmatprep.subr.mxu0 0.0
    %1197 = vmatpush1.msra.mxu0 0.0
    %1198 = vmatprep.subr.mxu0 0.0
    %1199 = vmatpush1.msra.mxu0 0.0
    %1200 = vmatprep.subr.mxu0 0.0
    %1201 = vmatpush1.msra.mxu0 0.0
    %1202 = vmatprep.subr.mxu0 0.0
    %1203 = vmatpush1.msra.mxu0 0.0
    %1204 = vmatprep.subr.mxu0 0.0
    %1205 = vmatpush1.msra.mxu0 0.0
    %1206 = vmatprep.subr.mxu0 0.0
    %1207 = vmatpush1.msra.mxu0 0.0
    %1208 = vmatprep.subr.mxu0 0.0
    %1209 = vmatpush1.msra.mxu0 0.0
    %1210 = vmatprep.subr.mxu0 0.0
    %1211 = vmatpush1.msra.mxu0 0.0
    %1212 = vmatprep.subr.mxu0 0.0
    %1213 = vmatpush1.msra.mxu0 0.0
    %1214 = vmatprep.subr.mxu0 0.0
    %1215 = vmatpush1.msra.mxu0 0.0
    %1216 = vmatprep.subr.mxu0 0.0
    %1217 = vmatpush1.msra.mxu0 0.0
    %1218 = vmatprep.subr.mxu0 0.0
    %1219 = vmatpush1.msra.mxu0 0.0
    %1220 = vmatprep.subr.mxu0 0.0
    %1221 = vmatpush1.msra.mxu0 0.0
    %1222 = vmatprep.mubr.f32.mxu0 0.0
    %1223 = vmatmul.mubr.f32.gmra.mrb[0].mxu0 %v1156
    %v1224 = vpop.f32.mrb[0].mxu0
    %v1225 = vadd.f32 0.0, %v1224
    %v1226 = vpop.f32.mrb[0].mxu0
    %1227 = vdwg.mxu0
    %1228 = vrot.lane.b32.xlu0 %v213, 112
    %v1229 = vpop.permute.xlu0 %1228
    %v1232 = vsel %vm374, %v1070, 0
    %1234 = vmatprep.subr.mxu0 0.0
    %1235 = vmatpush1.msra.mxu0 %v1229
    %1236 = vmatprep.subr.mxu0 0.0
    %1237 = vmatpush1.msra.mxu0 0.0
    %1238 = vmatprep.subr.mxu0 0.0
    %1239 = vmatpush1.msra.mxu0 0.0
    %1240 = vmatprep.subr.mxu0 0.0
    %1241 = vmatpush1.msra.mxu0 0.0
    %1242 = vmatprep.subr.mxu0 0.0
    %1243 = vmatpush1.msra.mxu0 0.0
    %1244 = vmatprep.subr.mxu0 0.0
    %1245 = vmatpush1.msra.mxu0 0.0
    %1246 = vmatprep.subr.mxu0 0.0
    %1247 = vmatpush1.msra.mxu0 0.0
    %1248 = vmatprep.subr.mxu0 0.0
    %1249 = vmatpush1.msra.mxu0 0.0
    %1250 = vmatprep.subr.mxu0 0.0
    %1251 = vmatpush1.msra.mxu0 0.0
    %1252 = vmatprep.subr.mxu0 0.0
    %1253 = vmatpush1.msra.mxu0 0.0
    %1254 = vmatprep.subr.mxu0 0.0
    %1255 = vmatpush1.msra.mxu0 0.0
    %1256 = vmatprep.subr.mxu0 0.0
    %1257 = vmatpush1.msra.mxu0 0.0
    %1258 = vmatprep.subr.mxu0 0.0
    %1259 = vmatpush1.msra.mxu0 0.0
    %1260 = vmatprep.subr.mxu0 0.0
    %1261 = vmatpush1.msra.mxu0 0.0
    %1262 = vmatprep.subr.mxu0 0.0
    %1263 = vmatpush1.msra.mxu0 0.0
    %1264 = vmatprep.subr.mxu0 0.0
    %1265 = vmatpush1.msra.mxu0 0.0
    %1266 = vmatprep.subr.mxu0 0.0
    %1267 = vmatpush1.msra.mxu0 0.0
    %1268 = vmatprep.subr.mxu0 0.0
    %1269 = vmatpush1.msra.mxu0 0.0
    %1270 = vmatprep.subr.mxu0 0.0
    %1271 = vmatpush1.msra.mxu0 0.0
    %1272 = vmatprep.subr.mxu0 0.0
    %1273 = vmatpush1.msra.mxu0 0.0
    %1274 = vmatprep.subr.mxu0 0.0
    %1275 = vmatpush1.msra.mxu0 0.0
    %1276 = vmatprep.subr.mxu0 0.0
    %1277 = vmatpush1.msra.mxu0 0.0
    %1278 = vmatprep.subr.mxu0 0.0
    %1279 = vmatpush1.msra.mxu0 0.0
    %1280 = vmatprep.subr.mxu0 0.0
    %1281 = vmatpush1.msra.mxu0 0.0
    %1282 = vmatprep.subr.mxu0 0.0
    %1283 = vmatpush1.msra.mxu0 0.0
    %1284 = vmatprep.subr.mxu0 0.0
    %1285 = vmatpush1.msra.mxu0 0.0
    %1286 = vmatprep.subr.mxu0 0.0
    %1287 = vmatpush1.msra.mxu0 0.0
    %1288 = vmatprep.subr.mxu0 0.0
    %1289 = vmatpush1.msra.mxu0 0.0
    %1290 = vmatprep.subr.mxu0 0.0
    %1291 = vmatpush1.msra.mxu0 0.0
    %1292 = vmatprep.subr.mxu0 0.0
    %1293 = vmatpush1.msra.mxu0 0.0
    %1294 = vmatprep.subr.mxu0 0.0
    %1295 = vmatpush1.msra.mxu0 0.0
    %1296 = vmatprep.subr.mxu0 0.0
    %1297 = vmatpush1.msra.mxu0 0.0
    %1298 = vmatprep.mubr.f32.mxu0 0.0
    %1299 = vmatmul.mubr.f32.gmra.mrb[0].mxu0 %v1232
    %v1300 = vpop.f32.mrb[0].mxu0
    %v1301 = vadd.f32 0.0, %v1300
    %v1302 = vpop.f32.mrb[0].mxu0
    %1303 = vdwg.mxu0
    %1304 = vrot.lane.b32.xlu0 %v218, 112
    %v1305 = vpop.permute.xlu0 %1304
    %v1308 = vsel %vm374, %v1071, 0
    %1310 = vmatprep.subr.mxu0 0.0
    %1311 = vmatpush1.msra.mxu0 %v1305
    %1312 = vmatprep.subr.mxu0 0.0
    %1313 = vmatpush1.msra.mxu0 0.0
    %1314 = vmatprep.subr.mxu0 0.0
    %1315 = vmatpush1.msra.mxu0 0.0
    %1316 = vmatprep.subr.mxu0 0.0
    %1317 = vmatpush1.msra.mxu0 0.0
    %1318 = vmatprep.subr.mxu0 0.0
    %1319 = vmatpush1.msra.mxu0 0.0
    %1320 = vmatprep.subr.mxu0 0.0
    %1321 = vmatpush1.msra.mxu0 0.0
    %1322 = vmatprep.subr.mxu0 0.0
    %1323 = vmatpush1.msra.mxu0 0.0
    %1324 = vmatprep.subr.mxu0 0.0
    %1325 = vmatpush1.msra.mxu0 0.0
    %1326 = vmatprep.subr.mxu0 0.0
    %1327 = vmatpush1.msra.mxu0 0.0
    %1328 = vmatprep.subr.mxu0 0.0
    %1329 = vmatpush1.msra.mxu0 0.0
    %1330 = vmatprep.subr.mxu0 0.0
    %1331 = vmatpush1.msra.mxu0 0.0
    %1332 = vmatprep.subr.mxu0 0.0
    %1333 = vmatpush1.msra.mxu0 0.0
    %1334 = vmatprep.subr.mxu0 0.0
    %1335 = vmatpush1.msra.mxu0 0.0
    %1336 = vmatprep.subr.mxu0 0.0
    %1337 = vmatpush1.msra.mxu0 0.0
    %1338 = vmatprep.subr.mxu0 0.0
    %1339 = vmatpush1.msra.mxu0 0.0
    %1340 = vmatprep.subr.mxu0 0.0
    %1341 = vmatpush1.msra.mxu0 0.0
    %1342 = vmatprep.subr.mxu0 0.0
    %1343 = vmatpush1.msra.mxu0 0.0
    %1344 = vmatprep.subr.mxu0 0.0
    %1345 = vmatpush1.msra.mxu0 0.0
    %1346 = vmatprep.subr.mxu0 0.0
    %1347 = vmatpush1.msra.mxu0 0.0
    %1348 = vmatprep.subr.mxu0 0.0
    %1349 = vmatpush1.msra.mxu0 0.0
    %1350 = vmatprep.subr.mxu0 0.0
    %1351 = vmatpush1.msra.mxu0 0.0
    %1352 = vmatprep.subr.mxu0 0.0
    %1353 = vmatpush1.msra.mxu0 0.0
    %1354 = vmatprep.subr.mxu0 0.0
    %1355 = vmatpush1.msra.mxu0 0.0
    %1356 = vmatprep.subr.mxu0 0.0
    %1357 = vmatpush1.msra.mxu0 0.0
    %1358 = vmatprep.subr.mxu0 0.0
    %1359 = vmatpush1.msra.mxu0 0.0
    %1360 = vmatprep.subr.mxu0 0.0
    %1361 = vmatpush1.msra.mxu0 0.0
    %1362 = vmatprep.subr.mxu0 0.0
    %1363 = vmatpush1.msra.mxu0 0.0
    %1364 = vmatprep.subr.mxu0 0.0
    %1365 = vmatpush1.msra.mxu0 0.0
    %1366 = vmatprep.subr.mxu0 0.0
    %1367 = vmatpush1.msra.mxu0 0.0
    %1368 = vmatprep.subr.mxu0 0.0
    %1369 = vmatpush1.msra.mxu0 0.0
    %1370 = vmatprep.subr.mxu0 0.0
    %1371 = vmatpush1.msra.mxu0 0.0
    %1372 = vmatprep.subr.mxu0 0.0
    %1373 = vmatpush1.msra.mxu0 0.0
    %1374 = vmatprep.mubr.f32.mxu0 0.0
    %1375 = vmatmul.mubr.f32.gmra.mrb[0].mxu0 %v1308
    %v1376 = vpop.f32.mrb[0].mxu0
    %v1377 = vadd.f32 0.0, %v1376
    %v1378 = vpop.f32.mrb[0].mxu0
    %1379 = vdwg.mxu0
    %1380 = vrot.lane.b32.xlu0 %v288, 112
    %v1381 = vpop.permute.xlu0 %1380
    %v1384 = vsel %vm374, %v1072, 0
    %1386 = vmatprep.subr.mxu0 0.0
    %1387 = vmatpush1.msra.mxu0 %v1381
    %1388 = vmatprep.subr.mxu0 0.0
    %1389 = vmatpush1.msra.mxu0 0.0
    %1390 = vmatprep.subr.mxu0 0.0
    %1391 = vmatpush1.msra.mxu0 0.0
    %1392 = vmatprep.subr.mxu0 0.0
    %1393 = vmatpush1.msra.mxu0 0.0
    %1394 = vmatprep.subr.mxu0 0.0
    %1395 = vmatpush1.msra.mxu0 0.0
    %1396 = vmatprep.subr.mxu0 0.0
    %1397 = vmatpush1.msra.mxu0 0.0
    %1398 = vmatprep.subr.mxu0 0.0
    %1399 = vmatpush1.msra.mxu0 0.0
    %1400 = vmatprep.subr.mxu0 0.0
    %1401 = vmatpush1.msra.mxu0 0.0
    %1402 = vmatprep.subr.mxu0 0.0
    %1403 = vmatpush1.msra.mxu0 0.0
    %1404 = vmatprep.subr.mxu0 0.0
    %1405 = vmatpush1.msra.mxu0 0.0
    %1406 = vmatprep.subr.mxu0 0.0
    %1407 = vmatpush1.msra.mxu0 0.0
    %1408 = vmatprep.subr.mxu0 0.0
    %1409 = vmatpush1.msra.mxu0 0.0
    %1410 = vmatprep.subr.mxu0 0.0
    %1411 = vmatpush1.msra.mxu0 0.0
    %1412 = vmatprep.subr.mxu0 0.0
    %1413 = vmatpush1.msra.mxu0 0.0
    %1414 = vmatprep.subr.mxu0 0.0
    %1415 = vmatpush1.msra.mxu0 0.0
    %1416 = vmatprep.subr.mxu0 0.0
    %1417 = vmatpush1.msra.mxu0 0.0
    %1418 = vmatprep.subr.mxu0 0.0
    %1419 = vmatpush1.msra.mxu0 0.0
    %1420 = vmatprep.subr.mxu0 0.0
    %1421 = vmatpush1.msra.mxu0 0.0
    %1422 = vmatprep.subr.mxu0 0.0
    %1423 = vmatpush1.msra.mxu0 0.0
    %1424 = vmatprep.subr.mxu0 0.0
    %1425 = vmatpush1.msra.mxu0 0.0
    %1426 = vmatprep.subr.mxu0 0.0
    %1427 = vmatpush1.msra.mxu0 0.0
    %1428 = vmatprep.subr.mxu0 0.0
    %1429 = vmatpush1.msra.mxu0 0.0
    %1430 = vmatprep.subr.mxu0 0.0
    %1431 = vmatpush1.msra.mxu0 0.0
    %1432 = vmatprep.subr.mxu0 0.0
    %1433 = vmatpush1.msra.mxu0 0.0
    %1434 = vmatprep.subr.mxu0 0.0
    %1435 = vmatpush1.msra.mxu0 0.0
    %1436 = vmatprep.subr.mxu0 0.0
    %1437 = vmatpush1.msra.mxu0 0.0
    %1438 = vmatprep.subr.mxu0 0.0
    %1439 = vmatpush1.msra.mxu0 0.0
    %1440 = vmatprep.subr.mxu0 0.0
    %1441 = vmatpush1.msra.mxu0 0.0
    %1442 = vmatprep.subr.mxu0 0.0
    %1443 = vmatpush1.msra.mxu0 0.0
    %1444 = vmatprep.subr.mxu0 0.0
    %1445 = vmatpush1.msra.mxu0 0.0
    %1446 = vmatprep.subr.mxu0 0.0
    %1447 = vmatpush1.msra.mxu0 0.0
    %1448 = vmatprep.subr.mxu0 0.0
    %1449 = vmatpush1.msra.mxu0 0.0
    %1450 = vmatprep.mubr.f32.mxu0 0.0
    %1451 = vmatmul.mubr.f32.gmra.mrb[0].mxu0 %v1384
    %v1452 = vpop.f32.mrb[0].mxu0
    %v1453 = vadd.f32 0.0, %v1452
    %v1454 = vpop.f32.mrb[0].mxu0
    %1455 = vdwg.mxu0
    %1456 = vrot.lane.b32.xlu0 %v293, 112
    %v1457 = vpop.permute.xlu0 %1456
    %v1460 = vsel %vm374, %v1073, 0
    %1462 = vmatprep.subr.mxu0 0.0
    %1463 = vmatpush1.msra.mxu0 %v1457
    %1464 = vmatprep.subr.mxu0 0.0
    %1465 = vmatpush1.msra.mxu0 0.0
    %1466 = vmatprep.subr.mxu0 0.0
    %1467 = vmatpush1.msra.mxu0 0.0
    %1468 = vmatprep.subr.mxu0 0.0
    %1469 = vmatpush1.msra.mxu0 0.0
    %1470 = vmatprep.subr.mxu0 0.0
    %1471 = vmatpush1.msra.mxu0 0.0
    %1472 = vmatprep.subr.mxu0 0.0
    %1473 = vmatpush1.msra.mxu0 0.0
    %1474 = vmatprep.subr.mxu0 0.0
    %1475 = vmatpush1.msra.mxu0 0.0
    %1476 = vmatprep.subr.mxu0 0.0
    %1477 = vmatpush1.msra.mxu0 0.0
    %1478 = vmatprep.subr.mxu0 0.0
    %1479 = vmatpush1.msra.mxu0 0.0
    %1480 = vmatprep.subr.mxu0 0.0
    %1481 = vmatpush1.msra.mxu0 0.0
    %1482 = vmatprep.subr.mxu0 0.0
    %1483 = vmatpush1.msra.mxu0 0.0
    %1484 = vmatprep.subr.mxu0 0.0
    %1485 = vmatpush1.msra.mxu0 0.0
    %1486 = vmatprep.subr.mxu0 0.0
    %1487 = vmatpush1.msra.mxu0 0.0
    %1488 = vmatprep.subr.mxu0 0.0
    %1489 = vmatpush1.msra.mxu0 0.0
    %1490 = vmatprep.subr.mxu0 0.0
    %1491 = vmatpush1.msra.mxu0 0.0
    %1492 = vmatprep.subr.mxu0 0.0
    %1493 = vmatpush1.msra.mxu0 0.0
    %1494 = vmatprep.subr.mxu0 0.0
    %1495 = vmatpush1.msra.mxu0 0.0
    %1496 = vmatprep.subr.mxu0 0.0
    %1497 = vmatpush1.msra.mxu0 0.0
    %1498 = vmatprep.subr.mxu0 0.0
    %1499 = vmatpush1.msra.mxu0 0.0
    %1500 = vmatprep.subr.mxu0 0.0
    %1501 = vmatpush1.msra.mxu0 0.0
    %1502 = vmatprep.subr.mxu0 0.0
    %1503 = vmatpush1.msra.mxu0 0.0
    %1504 = vmatprep.subr.mxu0 0.0
    %1505 = vmatpush1.msra.mxu0 0.0
    %1506 = vmatprep.subr.mxu0 0.0
    %1507 = vmatpush1.msra.mxu0 0.0
    %1508 = vmatprep.subr.mxu0 0.0
    %1509 = vmatpush1.msra.mxu0 0.0
    %1510 = vmatprep.subr.mxu0 0.0
    %1511 = vmatpush1.msra.mxu0 0.0
    %1512 = vmatprep.subr.mxu0 0.0
    %1513 = vmatpush1.msra.mxu0 0.0
    %1514 = vmatprep.subr.mxu0 0.0
    %1515 = vmatpush1.msra.mxu0 0.0
    %1516 = vmatprep.subr.mxu0 0.0
    %1517 = vmatpush1.msra.mxu0 0.0
    %1518 = vmatprep.subr.mxu0 0.0
    %1519 = vmatpush1.msra.mxu0 0.0
    %1520 = vmatprep.subr.mxu0 0.0
    %1521 = vmatpush1.msra.mxu0 0.0
    %1522 = vmatprep.subr.mxu0 0.0
    %1523 = vmatpush1.msra.mxu0 0.0
    %1524 = vmatprep.subr.mxu0 0.0
    %1525 = vmatpush1.msra.mxu0 0.0
    %1526 = vmatprep.mubr.f32.mxu0 0.0
    %1527 = vmatmul.mubr.f32.gmra.mrb[0].mxu0 %v1460
    %v1528 = vpop.f32.mrb[0].mxu0
    %v1529 = vadd.f32 0.0, %v1528
    %v1530 = vpop.f32.mrb[0].mxu0
    %1531 = vdwg.mxu0
    %1532 = vrot.lane.b32.xlu0 %v363, 112
    %v1533 = vpop.permute.xlu0 %1532
    %v1536 = vsel %vm374, %v1074, 0
    %1538 = vmatprep.subr.mxu0 0.0
    %1539 = vmatpush1.msra.mxu0 %v1533
    %1540 = vmatprep.subr.mxu0 0.0
    %1541 = vmatpush1.msra.mxu0 0.0
    %1542 = vmatprep.subr.mxu0 0.0
    %1543 = vmatpush1.msra.mxu0 0.0
    %1544 = vmatprep.subr.mxu0 0.0
    %1545 = vmatpush1.msra.mxu0 0.0
    %1546 = vmatprep.subr.mxu0 0.0
    %1547 = vmatpush1.msra.mxu0 0.0
    %1548 = vmatprep.subr.mxu0 0.0
    %1549 = vmatpush1.msra.mxu0 0.0
    %1550 = vmatprep.subr.mxu0 0.0
    %1551 = vmatpush1.msra.mxu0 0.0
    %1552 = vmatprep.subr.mxu0 0.0
    %1553 = vmatpush1.msra.mxu0 0.0
    %1554 = vmatprep.subr.mxu0 0.0
    %1555 = vmatpush1.msra.mxu0 0.0
    %1556 = vmatprep.subr.mxu0 0.0
    %1557 = vmatpush1.msra.mxu0 0.0
    %1558 = vmatprep.subr.mxu0 0.0
    %1559 = vmatpush1.msra.mxu0 0.0
    %1560 = vmatprep.subr.mxu0 0.0
    %1561 = vmatpush1.msra.mxu0 0.0
    %1562 = vmatprep.subr.mxu0 0.0
    %1563 = vmatpush1.msra.mxu0 0.0
    %1564 = vmatprep.subr.mxu0 0.0
    %1565 = vmatpush1.msra.mxu0 0.0
    %1566 = vmatprep.subr.mxu0 0.0
    %1567 = vmatpush1.msra.mxu0 0.0
    %1568 = vmatprep.subr.mxu0 0.0
    %1569 = vmatpush1.msra.mxu0 0.0
    %1570 = vmatprep.subr.mxu0 0.0
    %1571 = vmatpush1.msra.mxu0 0.0
    %1572 = vmatprep.subr.mxu0 0.0
    %1573 = vmatpush1.msra.mxu0 0.0
    %1574 = vmatprep.subr.mxu0 0.0
    %1575 = vmatpush1.msra.mxu0 0.0
    %1576 = vmatprep.subr.mxu0 0.0
    %1577 = vmatpush1.msra.mxu0 0.0
    %1578 = vmatprep.subr.mxu0 0.0
    %1579 = vmatpush1.msra.mxu0 0.0
    %1580 = vmatprep.subr.mxu0 0.0
    %1581 = vmatpush1.msra.mxu0 0.0
    %1582 = vmatprep.subr.mxu0 0.0
    %1583 = vmatpush1.msra.mxu0 0.0
    %1584 = vmatprep.subr.mxu0 0.0
    %1585 = vmatpush1.msra.mxu0 0.0
    %1586 = vmatprep.subr.mxu0 0.0
    %1587 = vmatpush1.msra.mxu0 0.0
    %1588 = vmatprep.subr.mxu0 0.0
    %1589 = vmatpush1.msra.mxu0 0.0
    %1590 = vmatprep.subr.mxu0 0.0
    %1591 = vmatpush1.msra.mxu0 0.0
    %1592 = vmatprep.subr.mxu0 0.0
    %1593 = vmatpush1.msra.mxu0 0.0
    %1594 = vmatprep.subr.mxu0 0.0
    %1595 = vmatpush1.msra.mxu0 0.0
    %1596 = vmatprep.subr.mxu0 0.0
    %1597 = vmatpush1.msra.mxu0 0.0
    %1598 = vmatprep.subr.mxu0 0.0
    %1599 = vmatpush1.msra.mxu0 0.0
    %1600 = vmatprep.subr.mxu0 0.0
    %1601 = vmatpush1.msra.mxu0 0.0
    %1602 = vmatprep.mubr.f32.mxu0 0.0
    %1603 = vmatmul.mubr.f32.gmra.mrb[0].mxu0 %v1536
    %v1604 = vpop.f32.mrb[0].mxu0
    %v1605 = vadd.f32 0.0, %v1604
    %v1606 = vpop.f32.mrb[0].mxu0
    %1607 = vdwg.mxu0
    %1608 = vrot.lane.b32.xlu0 %v368, 112
    %v1609 = vpop.permute.xlu0 %1608
    %v1612 = vsel %vm374, %v1075, 0
    %1614 = vmatprep.subr.mxu0 0.0
    %1615 = vmatpush1.msra.mxu0 %v1609
    %1616 = vmatprep.subr.mxu0 0.0
    %1617 = vmatpush1.msra.mxu0 0.0
    %1618 = vmatprep.subr.mxu0 0.0
    %1619 = vmatpush1.msra.mxu0 0.0
    %1620 = vmatprep.subr.mxu0 0.0
    %1621 = vmatpush1.msra.mxu0 0.0
    %1622 = vmatprep.subr.mxu0 0.0
    %1623 = vmatpush1.msra.mxu0 0.0
    %1624 = vmatprep.subr.mxu0 0.0
    %1625 = vmatpush1.msra.mxu0 0.0
    %1626 = vmatprep.subr.mxu0 0.0
    %1627 = vmatpush1.msra.mxu0 0.0
    %1628 = vmatprep.subr.mxu0 0.0
    %1629 = vmatpush1.msra.mxu0 0.0
    %1630 = vmatprep.subr.mxu0 0.0
    %1631 = vmatpush1.msra.mxu0 0.0
    %1632 = vmatprep.subr.mxu0 0.0
    %1633 = vmatpush1.msra.mxu0 0.0
    %1634 = vmatprep.subr.mxu0 0.0
    %1635 = vmatpush1.msra.mxu0 0.0
    %1636 = vmatprep.subr.mxu0 0.0
    %1637 = vmatpush1.msra.mxu0 0.0
    %1638 = vmatprep.subr.mxu0 0.0
    %1639 = vmatpush1.msra.mxu0 0.0
    %1640 = vmatprep.subr.mxu0 0.0
    %1641 = vmatpush1.msra.mxu0 0.0
    %1642 = vmatprep.subr.mxu0 0.0
    %1643 = vmatpush1.msra.mxu0 0.0
    %1644 = vmatprep.subr.mxu0 0.0
    %1645 = vmatpush1.msra.mxu0 0.0
    %1646 = vmatprep.subr.mxu0 0.0
    %1647 = vmatpush1.msra.mxu0 0.0
    %1648 = vmatprep.subr.mxu0 0.0
    %1649 = vmatpush1.msra.mxu0 0.0
    %1650 = vmatprep.subr.mxu0 0.0
    %1651 = vmatpush1.msra.mxu0 0.0
    %1652 = vmatprep.subr.mxu0 0.0
    %1653 = vmatpush1.msra.mxu0 0.0
    %1654 = vmatprep.subr.mxu0 0.0
    %1655 = vmatpush1.msra.mxu0 0.0
    %1656 = vmatprep.subr.mxu0 0.0
    %1657 = vmatpush1.msra.mxu0 0.0
    %1658 = vmatprep.subr.mxu0 0.0
    %1659 = vmatpush1.msra.mxu0 0.0
    %1660 = vmatprep.subr.mxu0 0.0
    %1661 = vmatpush1.msra.mxu0 0.0
    %1662 = vmatprep.subr.mxu0 0.0
    %1663 = vmatpush1.msra.mxu0 0.0
    %1664 = vmatprep.subr.mxu0 0.0
    %1665 = vmatpush1.msra.mxu0 0.0
    %1666 = vmatprep.subr.mxu0 0.0
    %1667 = vmatpush1.msra.mxu0 0.0
    %1668 = vmatprep.subr.mxu0 0.0
    %1669 = vmatpush1.msra.mxu0 0.0
    %1670 = vmatprep.subr.mxu0 0.0
    %1671 = vmatpush1.msra.mxu0 0.0
    %1672 = vmatprep.subr.mxu0 0.0
    %1673 = vmatpush1.msra.mxu0 0.0
    %1674 = vmatprep.subr.mxu0 0.0
    %1675 = vmatpush1.msra.mxu0 0.0
    %1676 = vmatprep.subr.mxu0 0.0
    %1677 = vmatpush1.msra.mxu0 0.0
    %1678 = vmatprep.mubr.f32.mxu0 0.0
    %1679 = vmatmul.mubr.f32.gmra.mrb[0].mxu0 %v1612
    %v1680 = vpop.f32.mrb[0].mxu0
    %v1681 = vadd.f32 0.0, %v1680
    %v1682 = vpop.f32.mrb[0].mxu0
    %1683 = vdwg.mxu0
    %v1685 = vsel %vm374, %v1149, 0
    %v1688 = vsel %vm374, %v1225, 0
    %1690 = vmatprep.subr.mxu0 0.0
    %1691 = vmatpush1.msra.mxu0 %v33
    %1692 = vmatprep.subr.mxu0 0.0
    %1693 = vmatpush1.msra.mxu0 0.0
    %1694 = vmatprep.subr.mxu0 0.0
    %1695 = vmatpush1.msra.mxu0 0.0
    %1696 = vmatprep.subr.mxu0 0.0
    %1697 = vmatpush1.msra.mxu0 0.0
    %1698 = vmatprep.subr.mxu0 0.0
    %1699 = vmatpush1.msra.mxu0 0.0
    %1700 = vmatprep.subr.mxu0 0.0
    %1701 = vmatpush1.msra.mxu0 0.0
    %1702 = vmatprep.subr.mxu0 0.0
    %1703 = vmatpush1.msra.mxu0 0.0
    %1704 = vmatprep.subr.mxu0 0.0
    %1705 = vmatpush1.msra.mxu0 0.0
    %1706 = vmatprep.subr.mxu0 0.0
    %1707 = vmatpush1.msra.mxu0 0.0
    %1708 = vmatprep.subr.mxu0 0.0
    %1709 = vmatpush1.msra.mxu0 0.0
    %1710 = vmatprep.subr.mxu0 0.0
    %1711 = vmatpush1.msra.mxu0 0.0
    %1712 = vmatprep.subr.mxu0 0.0
    %1713 = vmatpush1.msra.mxu0 0.0
    %1714 = vmatprep.subr.mxu0 0.0
    %1715 = vmatpush1.msra.mxu0 0.0
    %1716 = vmatprep.subr.mxu0 0.0
    %1717 = vmatpush1.msra.mxu0 0.0
    %1718 = vmatprep.subr.mxu0 0.0
    %1719 = vmatpush1.msra.mxu0 0.0
    %1720 = vmatprep.subr.mxu0 0.0
    %1721 = vmatpush1.msra.mxu0 0.0
    %1722 = vmatprep.subr.mxu0 0.0
    %1723 = vmatpush1.msra.mxu0 0.0
    %1724 = vmatprep.subr.mxu0 0.0
    %1725 = vmatpush1.msra.mxu0 0.0
    %1726 = vmatprep.subr.mxu0 0.0
    %1727 = vmatpush1.msra.mxu0 0.0
    %1728 = vmatprep.subr.mxu0 0.0
    %1729 = vmatpush1.msra.mxu0 0.0
    %1730 = vmatprep.subr.mxu0 0.0
    %1731 = vmatpush1.msra.mxu0 0.0
    %1732 = vmatprep.subr.mxu0 0.0
    %1733 = vmatpush1.msra.mxu0 0.0
    %1734 = vmatprep.subr.mxu0 0.0
    %1735 = vmatpush1.msra.mxu0 0.0
    %1736 = vmatprep.subr.mxu0 0.0
    %1737 = vmatpush1.msra.mxu0 0.0
    %1738 = vmatprep.subr.mxu0 0.0
    %1739 = vmatpush1.msra.mxu0 0.0
    %1740 = vmatprep.subr.mxu0 0.0
    %1741 = vmatpush1.msra.mxu0 0.0
    %1742 = vmatprep.subr.mxu0 0.0
    %1743 = vmatpush1.msra.mxu0 0.0
    %1744 = vmatprep.subr.mxu0 0.0
    %1745 = vmatpush1.msra.mxu0 0.0
    %1746 = vmatprep.subr.mxu0 0.0
    %1747 = vmatpush1.msra.mxu0 0.0
    %1748 = vmatprep.subr.mxu0 0.0
    %1749 = vmatpush1.msra.mxu0 0.0
    %1750 = vmatprep.subr.mxu0 0.0
    %1751 = vmatpush1.msra.mxu0 0.0
    %1752 = vmatprep.subr.mxu0 0.0
    %1753 = vmatpush1.msra.mxu0 0.0
    %1754 = vmatprep.mubr.f32.mxu0 0.0
    %1755 = vmatmul.mubr.f32.gmra.mrb[0].mxu0 %v1685
    %v1756 = vpop.f32.mrb[0].mxu0
    %v1757 = vadd.f32 0.0, %v1756
    %v1758 = vpop.f32.mrb[0].mxu0
    %1759 = vmatprep.mubr.f32.mxu0 0.0
    %1760 = vmatmul.mubr.f32.gmra.mrb[0].mxu0 %v1688
    %v1761 = vpop.f32.mrb[0].mxu0
    %v1762 = vadd.f32 0.0, %v1761
    %v1763 = vpop.f32.mrb[0].mxu0
    %1764 = vdwg.mxu0
    %v1766 = vsel %vm374, %v1301, 0
    %v1769 = vsel %vm374, %v1377, 0
    %1771 = vmatprep.subr.mxu0 0.0
    %1772 = vmatpush1.msra.mxu0 %v34
    %1773 = vmatprep.subr.mxu0 0.0
    %1774 = vmatpush1.msra.mxu0 0.0
    %1775 = vmatprep.subr.mxu0 0.0
    %1776 = vmatpush1.msra.mxu0 0.0
    %1777 = vmatprep.subr.mxu0 0.0
    %1778 = vmatpush1.msra.mxu0 0.0
    %1779 = vmatprep.subr.mxu0 0.0
    %1780 = vmatpush1.msra.mxu0 0.0
    %1781 = vmatprep.subr.mxu0 0.0
    %1782 = vmatpush1.msra.mxu0 0.0
    %1783 = vmatprep.subr.mxu0 0.0
    %1784 = vmatpush1.msra.mxu0 0.0
    %1785 = vmatprep.subr.mxu0 0.0
    %1786 = vmatpush1.msra.mxu0 0.0
    %1787 = vmatprep.subr.mxu0 0.0
    %1788 = vmatpush1.msra.mxu0 0.0
    %1789 = vmatprep.subr.mxu0 0.0
    %1790 = vmatpush1.msra.mxu0 0.0
    %1791 = vmatprep.subr.mxu0 0.0
    %1792 = vmatpush1.msra.mxu0 0.0
    %1793 = vmatprep.subr.mxu0 0.0
    %1794 = vmatpush1.msra.mxu0 0.0
    %1795 = vmatprep.subr.mxu0 0.0
    %1796 = vmatpush1.msra.mxu0 0.0
    %1797 = vmatprep.subr.mxu0 0.0
    %1798 = vmatpush1.msra.mxu0 0.0
    %1799 = vmatprep.subr.mxu0 0.0
    %1800 = vmatpush1.msra.mxu0 0.0
    %1801 = vmatprep.subr.mxu0 0.0
    %1802 = vmatpush1.msra.mxu0 0.0
    %1803 = vmatprep.subr.mxu0 0.0
    %1804 = vmatpush1.msra.mxu0 0.0
    %1805 = vmatprep.subr.mxu0 0.0
    %1806 = vmatpush1.msra.mxu0 0.0
    %1807 = vmatprep.subr.mxu0 0.0
    %1808 = vmatpush1.msra.mxu0 0.0
    %1809 = vmatprep.subr.mxu0 0.0
    %1810 = vmatpush1.msra.mxu0 0.0
    %1811 = vmatprep.subr.mxu0 0.0
    %1812 = vmatpush1.msra.mxu0 0.0
    %1813 = vmatprep.subr.mxu0 0.0
    %1814 = vmatpush1.msra.mxu0 0.0
    %1815 = vmatprep.subr.mxu0 0.0
    %1816 = vmatpush1.msra.mxu0 0.0
    %1817 = vmatprep.subr.mxu0 0.0
    %1818 = vmatpush1.msra.mxu0 0.0
    %1819 = vmatprep.subr.mxu0 0.0
    %1820 = vmatpush1.msra.mxu0 0.0
    %1821 = vmatprep.subr.mxu0 0.0
    %1822 = vmatpush1.msra.mxu0 0.0
    %1823 = vmatprep.subr.mxu0 0.0
    %1824 = vmatpush1.msra.mxu0 0.0
    %1825 = vmatprep.subr.mxu0 0.0
    %1826 = vmatpush1.msra.mxu0 0.0
    %1827 = vmatprep.subr.mxu0 0.0
    %1828 = vmatpush1.msra.mxu0 0.0
    %1829 = vmatprep.subr.mxu0 0.0
    %1830 = vmatpush1.msra.mxu0 0.0
    %1831 = vmatprep.subr.mxu0 0.0
    %1832 = vmatpush1.msra.mxu0 0.0
    %1833 = vmatprep.subr.mxu0 0.0
    %1834 = vmatpush1.msra.mxu0 0.0
    %1835 = vmatprep.mubr.f32.mxu0 0.0
    %1836 = vmatmul.mubr.f32.gmra.mrb[0].mxu0 %v1766
    %v1837 = vpop.f32.mrb[0].mxu0
    %v1838 = vadd.f32 0.0, %v1837
    %v1839 = vpop.f32.mrb[0].mxu0
    %1840 = vmatprep.mubr.f32.mxu0 0.0
    %1841 = vmatmul.mubr.f32.gmra.mrb[0].mxu0 %v1769
    %v1842 = vpop.f32.mrb[0].mxu0
    %v1843 = vadd.f32 0.0, %v1842
    %v1844 = vpop.f32.mrb[0].mxu0
    %1845 = vdwg.mxu0
    %v1847 = vsel %vm374, %v1453, 0
    %v1850 = vsel %vm374, %v1529, 0
    %1852 = vmatprep.subr.mxu0 0.0
    %1853 = vmatpush1.msra.mxu0 %v35
    %1854 = vmatprep.subr.mxu0 0.0
    %1855 = vmatpush1.msra.mxu0 0.0
    %1856 = vmatprep.subr.mxu0 0.0
    %1857 = vmatpush1.msra.mxu0 0.0
    %1858 = vmatprep.subr.mxu0 0.0
    %1859 = vmatpush1.msra.mxu0 0.0
    %1860 = vmatprep.subr.mxu0 0.0
    %1861 = vmatpush1.msra.mxu0 0.0
    %1862 = vmatprep.subr.mxu0 0.0
    %1863 = vmatpush1.msra.mxu0 0.0
    %1864 = vmatprep.subr.mxu0 0.0
    %1865 = vmatpush1.msra.mxu0 0.0
    %1866 = vmatprep.subr.mxu0 0.0
    %1867 = vmatpush1.msra.mxu0 0.0
    %1868 = vmatprep.subr.mxu0 0.0
    %1869 = vmatpush1.msra.mxu0 0.0
    %1870 = vmatprep.subr.mxu0 0.0
    %1871 = vmatpush1.msra.mxu0 0.0
    %1872 = vmatprep.subr.mxu0 0.0
    %1873 = vmatpush1.msra.mxu0 0.0
    %1874 = vmatprep.subr.mxu0 0.0
    %1875 = vmatpush1.msra.mxu0 0.0
    %1876 = vmatprep.subr.mxu0 0.0
    %1877 = vmatpush1.msra.mxu0 0.0
    %1878 = vmatprep.subr.mxu0 0.0
    %1879 = vmatpush1.msra.mxu0 0.0
    %1880 = vmatprep.subr.mxu0 0.0
    %1881 = vmatpush1.msra.mxu0 0.0
    %1882 = vmatprep.subr.mxu0 0.0
    %1883 = vmatpush1.msra.mxu0 0.0
    %1884 = vmatprep.subr.mxu0 0.0
    %1885 = vmatpush1.msra.mxu0 0.0
    %1886 = vmatprep.subr.mxu0 0.0
    %1887 = vmatpush1.msra.mxu0 0.0
    %1888 = vmatprep.subr.mxu0 0.0
    %1889 = vmatpush1.msra.mxu0 0.0
    %1890 = vmatprep.subr.mxu0 0.0
    %1891 = vmatpush1.msra.mxu0 0.0
    %1892 = vmatprep.subr.mxu0 0.0
    %1893 = vmatpush1.msra.mxu0 0.0
    %1894 = vmatprep.subr.mxu0 0.0
    %1895 = vmatpush1.msra.mxu0 0.0
    %1896 = vmatprep.subr.mxu0 0.0
    %1897 = vmatpush1.msra.mxu0 0.0
    %1898 = vmatprep.subr.mxu0 0.0
    %1899 = vmatpush1.msra.mxu0 0.0
    %1900 = vmatprep.subr.mxu0 0.0
    %1901 = vmatpush1.msra.mxu0 0.0
    %1902 = vmatprep.subr.mxu0 0.0
    %1903 = vmatpush1.msra.mxu0 0.0
    %1904 = vmatprep.subr.mxu0 0.0
    %1905 = vmatpush1.msra.mxu0 0.0
    %1906 = vmatprep.subr.mxu0 0.0
    %1907 = vmatpush1.msra.mxu0 0.0
    %1908 = vmatprep.subr.mxu0 0.0
    %1909 = vmatpush1.msra.mxu0 0.0
    %1910 = vmatprep.subr.mxu0 0.0
    %1911 = vmatpush1.msra.mxu0 0.0
    %1912 = vmatprep.subr.mxu0 0.0
    %1913 = vmatpush1.msra.mxu0 0.0
    %1914 = vmatprep.subr.mxu0 0.0
    %1915 = vmatpush1.msra.mxu0 0.0
    %1916 = vmatprep.mubr.f32.mxu0 0.0
    %1917 = vmatmul.mubr.f32.gmra.mrb[0].mxu0 %v1847
    %v1918 = vpop.f32.mrb[0].mxu0
    %v1919 = vadd.f32 0.0, %v1918
    %v1920 = vpop.f32.mrb[0].mxu0
    %1921 = vmatprep.mubr.f32.mxu0 0.0
    %1922 = vmatmul.mubr.f32.gmra.mrb[0].mxu0 %v1850
    %v1923 = vpop.f32.mrb[0].mxu0
    %v1924 = vadd.f32 0.0, %v1923
    %v1925 = vpop.f32.mrb[0].mxu0
    %1926 = vdwg.mxu0
    %v1928 = vsel %vm374, %v1605, 0
    %v1931 = vsel %vm374, %v1681, 0
    %1933 = vmatprep.subr.mxu0 0.0
    %1934 = vmatpush1.msra.mxu0 %v36
    %1935 = vmatprep.subr.mxu0 0.0
    %1936 = vmatpush1.msra.mxu0 0.0
    %1937 = vmatprep.subr.mxu0 0.0
    %1938 = vmatpush1.msra.mxu0 0.0
    %1939 = vmatprep.subr.mxu0 0.0
    %1940 = vmatpush1.msra.mxu0 0.0
    %1941 = vmatprep.subr.mxu0 0.0
    %1942 = vmatpush1.msra.mxu0 0.0
    %1943 = vmatprep.subr.mxu0 0.0
    %1944 = vmatpush1.msra.mxu0 0.0
    %1945 = vmatprep.subr.mxu0 0.0
    %1946 = vmatpush1.msra.mxu0 0.0
    %1947 = vmatprep.subr.mxu0 0.0
    %1948 = vmatpush1.msra.mxu0 0.0
    %1949 = vmatprep.subr.mxu0 0.0
    %1950 = vmatpush1.msra.mxu0 0.0
    %1951 = vmatprep.subr.mxu0 0.0
    %1952 = vmatpush1.msra.mxu0 0.0
    %1953 = vmatprep.subr.mxu0 0.0
    %1954 = vmatpush1.msra.mxu0 0.0
    %1955 = vmatprep.subr.mxu0 0.0
    %1956 = vmatpush1.msra.mxu0 0.0
    %1957 = vmatprep.subr.mxu0 0.0
    %1958 = vmatpush1.msra.mxu0 0.0
    %1959 = vmatprep.subr.mxu0 0.0
    %1960 = vmatpush1.msra.mxu0 0.0
    %1961 = vmatprep.subr.mxu0 0.0
    %1962 = vmatpush1.msra.mxu0 0.0
    %1963 = vmatprep.subr.mxu0 0.0
    %1964 = vmatpush1.msra.mxu0 0.0
    %1965 = vmatprep.subr.mxu0 0.0
    %1966 = vmatpush1.msra.mxu0 0.0
    %1967 = vmatprep.subr.mxu0 0.0
    %1968 = vmatpush1.msra.mxu0 0.0
    %1969 = vmatprep.subr.mxu0 0.0
    %1970 = vmatpush1.msra.mxu0 0.0
    %1971 = vmatprep.subr.mxu0 0.0
    %1972 = vmatpush1.msra.mxu0 0.0
    %1973 = vmatprep.subr.mxu0 0.0
    %1974 = vmatpush1.msra.mxu0 0.0
    %1975 = vmatprep.subr.mxu0 0.0
    %1976 = vmatpush1.msra.mxu0 0.0
    %1977 = vmatprep.subr.mxu0 0.0
    %1978 = vmatpush1.msra.mxu0 0.0
    %1979 = vmatprep.subr.mxu0 0.0
    %1980 = vmatpush1.msra.mxu0 0.0
    %1981 = vmatprep.subr.mxu0 0.0
    %1982 = vmatpush1.msra.mxu0 0.0
    %1983 = vmatprep.subr.mxu0 0.0
    %1984 = vmatpush1.msra.mxu0 0.0
    %1985 = vmatprep.subr.mxu0 0.0
    %1986 = vmatpush1.msra.mxu0 0.0
    %1987 = vmatprep.subr.mxu0 0.0
    %1988 = vmatpush1.msra.mxu0 0.0
    %1989 = vmatprep.subr.mxu0 0.0
    %1990 = vmatpush1.msra.mxu0 0.0
    %1991 = vmatprep.subr.mxu0 0.0
    %1992 = vmatpush1.msra.mxu0 0.0
    %1993 = vmatprep.subr.mxu0 0.0
    %1994 = vmatpush1.msra.mxu0 0.0
    %1995 = vmatprep.subr.mxu0 0.0
    %1996 = vmatpush1.msra.mxu0 0.0
    %1997 = vmatprep.mubr.f32.mxu0 0.0
    %1998 = vmatmul.mubr.f32.gmra.mrb[0].mxu0 %v1928
    %v1999 = vpop.f32.mrb[0].mxu0
    %v2000 = vadd.f32 0.0, %v1999
    %v2001 = vpop.f32.mrb[0].mxu0
    %2002 = vmatprep.mubr.f32.mxu0 0.0
    %2003 = vmatmul.mubr.f32.gmra.mrb[0].mxu0 %v1931
    %v2004 = vpop.f32.mrb[0].mxu0
    %v2005 = vadd.f32 0.0, %v2004
    %v2006 = vpop.f32.mrb[0].mxu0
    %2007 = vdwg.mxu0
    %v2008 = vlaneseq
    %v2009 = vshrl.u32 %v2008, 7
    %v2010 = vsub.s32 0, %v2009
    %v2011 = vrot.slane %v57, %v2010
    %v2012 = vadd.f32 %v2011, %v1757
    %v2013 = vadd.f32 %v2011, %v1762
    %v2014 = vadd.f32 %v2012, %v1838
    %v2015 = vadd.f32 %v2013, %v1843
    %v2016 = vadd.f32 %v2014, %v1919
    %v2017 = vadd.f32 %v2015, %v1924
    %v2018 = vadd.f32 %v2016, %v2000
    %v2019 = vadd.f32 %v2017, %v2005
    %v2020 = vadd.f32 %v2018, %v15
    %v2021 = vadd.f32 %v2019, %v16
    %v2022 = vsel %vm64, %v2020, 0.0
    %2023 = vadd.xlane.f32.xlu0 %v2022
    %v2024 = vpop.xlane.xlu0 %2023
    %v2025 = vsel %vm64, %v2021, 0.0
    %2026 = vadd.xlane.f32.xlu0 %v2025
    %v2027 = vpop.xlane.xlu0 %2026
    %v2028 = vrcp.pop 32.0
    %v2029 = vmul.f32 %v2024, %v2028
    %v2030 = vmul.f32 %v2027, %v2028
    %v2031 = vsub.f32 %v2020, %v2029
    %v2032 = vsub.f32 %v2021, %v2030
    %v2033 = vmul.f32 %v2031, %v2031
    %v2034 = vmul.f32 %v2032, %v2032
    %v2035 = vsel %vm64, %v2033, 0.0
    %2036 = vadd.xlane.f32.xlu0 %v2035
    %v2037 = vpop.xlane.xlu0 %2036
    %v2038 = vsel %vm64, %v2034, 0.0
    %2039 = vadd.xlane.f32.xlu0 %v2038
    %v2040 = vpop.xlane.xlu0 %2039
    %v2041 = vmul.f32 %v2037, %v2028
    %v2042 = vmul.f32 %v2040, %v2028
    %v2043 = vadd.f32 %v2041, 1e-05
    %v2044 = vadd.f32 %v2042, 1e-05
    %v2045 = vrsqrt.pop %v2043
    %v2046 = vrsqrt.pop %v2044
    %v2047 = vmul.f32 %v2031, %v2045
    %v2048 = vmul.f32 %v2032, %v2046
    %v2049 = vlaneseq
    %v2050 = vshrl.u32 %v2049, 7
    %v2051 = vsub.s32 0, %v2050
    %v2052 = vrot.slane %v58, %v2051
    %v2053 = vmul.f32 %v2047, %v2052
    %v2054 = vmul.f32 %v2048, %v2052
    %v2055 = vlaneseq
    %v2056 = vshrl.u32 %v2055, 7
    %v2057 = vsub.s32 0, %v2056
    %v2058 = vrot.slane %v59, %v2057
    %v2059 = vadd.f32 %v2053, %v2058
    %v2060 = vadd.f32 %v2054, %v2058
    %v2061 = vlaneseq
    %v2062 = vshrl.u32 %v2061, 7
    %v2063 = vsub.s32 0, %v2062
    %v2064 = vrot.slane %v60, %v2063
    %v2066 = vsel %vm64, %v2059, 0
    %v2069 = vsel %vm64, %v2060, 0
    %2071 = vmatprep.subr.mxu0 0.0
    %2072 = vmatpush1.msra.mxu0 %v37
    %2073 = vmatprep.subr.mxu0 0.0
    %2074 = vmatpush1.msra.mxu0 %v38
    %2075 = vmatprep.subr.mxu0 0.0
    %2076 = vmatpush1.msra.mxu0 %v39
    %2077 = vmatprep.subr.mxu0 0.0
    %2078 = vmatpush1.msra.mxu0 %v40
    %2079 = vmatprep.subr.mxu0 0.0
    %2080 = vmatpush1.msra.mxu0 0.0
    %2081 = vmatprep.subr.mxu0 0.0
    %2082 = vmatpush1.msra.mxu0 0.0
    %2083 = vmatprep.subr.mxu0 0.0
    %2084 = vmatpush1.msra.mxu0 0.0
    %2085 = vmatprep.subr.mxu0 0.0
    %2086 = vmatpush1.msra.mxu0 0.0
    %2087 = vmatprep.subr.mxu0 0.0
    %2088 = vmatpush1.msra.mxu0 0.0
    %2089 = vmatprep.subr.mxu0 0.0
    %2090 = vmatpush1.msra.mxu0 0.0
    %2091 = vmatprep.subr.mxu0 0.0
    %2092 = vmatpush1.msra.mxu0 0.0
    %2093 = vmatprep.subr.mxu0 0.0
    %2094 = vmatpush1.msra.mxu0 0.0
    %2095 = vmatprep.subr.mxu0 0.0
    %2096 = vmatpush1.msra.mxu0 0.0
    %2097 = vmatprep.subr.mxu0 0.0
    %2098 = vmatpush1.msra.mxu0 0.0
    %2099 = vmatprep.subr.mxu0 0.0
    %2100 = vmatpush1.msra.mxu0 0.0
    %2101 = vmatprep.subr.mxu0 0.0
    %2102 = vmatpush1.msra.mxu0 0.0
    %2103 = vmatprep.subr.mxu0 0.0
    %2104 = vmatpush1.msra.mxu0 0.0
    %2105 = vmatprep.subr.mxu0 0.0
    %2106 = vmatpush1.msra.mxu0 0.0
    %2107 = vmatprep.subr.mxu0 0.0
    %2108 = vmatpush1.msra.mxu0 0.0
    %2109 = vmatprep.subr.mxu0 0.0
    %2110 = vmatpush1.msra.mxu0 0.0
    %2111 = vmatprep.subr.mxu0 0.0
    %2112 = vmatpush1.msra.mxu0 0.0
    %2113 = vmatprep.subr.mxu0 0.0
    %2114 = vmatpush1.msra.mxu0 0.0
    %2115 = vmatprep.subr.mxu0 0.0
    %2116 = vmatpush1.msra.mxu0 0.0
    %2117 = vmatprep.subr.mxu0 0.0
    %2118 = vmatpush1.msra.mxu0 0.0
    %2119 = vmatprep.subr.mxu0 0.0
    %2120 = vmatpush1.msra.mxu0 0.0
    %2121 = vmatprep.subr.mxu0 0.0
    %2122 = vmatpush1.msra.mxu0 0.0
    %2123 = vmatprep.subr.mxu0 0.0
    %2124 = vmatpush1.msra.mxu0 0.0
    %2125 = vmatprep.subr.mxu0 0.0
    %2126 = vmatpush1.msra.mxu0 0.0
    %2127 = vmatprep.subr.mxu0 0.0
    %2128 = vmatpush1.msra.mxu0 0.0
    %2129 = vmatprep.subr.mxu0 0.0
    %2130 = vmatpush1.msra.mxu0 0.0
    %2131 = vmatprep.subr.mxu0 0.0
    %2132 = vmatpush1.msra.mxu0 0.0
    %2133 = vmatprep.subr.mxu0 0.0
    %2134 = vmatpush1.msra.mxu0 0.0
    %2135 = vmatprep.mubr.f32.mxu0 0.0
    %2136 = vmatmul.mubr.f32.gmra.mrb[0].mxu0 %v2066
    %v2137 = vpop.f32.mrb[0].mxu0
    %v2138 = vadd.f32 %v2064, %v2137
    %v2139 = vpop.f32.mrb[0].mxu0
    %2140 = vmatprep.mubr.f32.mxu0 0.0
    %2141 = vmatmul.mubr.f32.gmra.mrb[0].mxu0 %v2069
    %v2142 = vpop.f32.mrb[0].mxu0
    %v2143 = vadd.f32 %v2064, %v2142
    %v2144 = vpop.f32.mrb[0].mxu0
    %2145 = vdwg.mxu0
    %v2146 = vmax.f32 %v2138, 0.0
    %v2147 = vmax.f32 %v2143, 0.0
    %v2148 = vlaneseq
    %v2149 = vshrl.u32 %v2148, 7
    %v2150 = vsub.s32 0, %v2149
    %v2151 = vrot.slane %v61, %v2150
    %vm2152 = vcmask 523264
    %v2154 = vsel %vm2152, %v2146, 0
    %v2157 = vsel %vm2152, %v2147, 0
    %2159 = vmatprep.subr.mxu0 0.0
    %2160 = vmatpush1.msra.mxu0 %v41
    %2161 = vmatprep.subr.mxu0 0.0
    %2162 = vmatpush1.msra.mxu0 %v42
    %2163 = vmatprep.subr.mxu0 0.0
    %2164 = vmatpush1.msra.mxu0 %v43
    %2165 = vmatprep.subr.mxu0 0.0
    %2166 = vmatpush1.msra.mxu0 %v44
    %2167 = vmatprep.subr.mxu0 0.0
    %2168 = vmatpush1.msra.mxu0 %v45
    %2169 = vmatprep.subr.mxu0 0.0
    %2170 = vmatpush1.msra.mxu0 %v46
    %2171 = vmatprep.subr.mxu0 0.0
    %2172 = vmatpush1.msra.mxu0 %v47
    %2173 = vmatprep.subr.mxu0 0.0
    %2174 = vmatpush1.msra.mxu0 %v48
    %2175 = vmatprep.subr.mxu0 0.0
    %2176 = vmatpush1.msra.mxu0 0.0
    %2177 = vmatprep.subr.mxu0 0.0
    %2178 = vmatpush1.msra.mxu0 0.0
    %2179 = vmatprep.subr.mxu0 0.0
    %2180 = vmatpush1.msra.mxu0 0.0
    %2181 = vmatprep.subr.mxu0 0.0
    %2182 = vmatpush1.msra.mxu0 0.0
    %2183 = vmatprep.subr.mxu0 0.0
    %2184 = vmatpush1.msra.mxu0 0.0
    %2185 = vmatprep.subr.mxu0 0.0
    %2186 = vmatpush1.msra.mxu0 0.0
    %2187 = vmatprep.subr.mxu0 0.0
    %2188 = vmatpush1.msra.mxu0 0.0
    %2189 = vmatprep.subr.mxu0 0.0
    %2190 = vmatpush1.msra.mxu0 0.0
    %2191 = vmatprep.subr.mxu0 0.0
    %2192 = vmatpush1.msra.mxu0 0.0
    %2193 = vmatprep.subr.mxu0 0.0
    %2194 = vmatpush1.msra.mxu0 0.0
    %2195 = vmatprep.subr.mxu0 0.0
    %2196 = vmatpush1.msra.mxu0 0.0
    %2197 = vmatprep.subr.mxu0 0.0
    %2198 = vmatpush1.msra.mxu0 0.0
    %2199 = vmatprep.subr.mxu0 0.0
    %2200 = vmatpush1.msra.mxu0 0.0
    %2201 = vmatprep.subr.mxu0 0.0
    %2202 = vmatpush1.msra.mxu0 0.0
    %2203 = vmatprep.subr.mxu0 0.0
    %2204 = vmatpush1.msra.mxu0 0.0
    %2205 = vmatprep.subr.mxu0 0.0
    %2206 = vmatpush1.msra.mxu0 0.0
    %2207 = vmatprep.subr.mxu0 0.0
    %2208 = vmatpush1.msra.mxu0 0.0
    %2209 = vmatprep.subr.mxu0 0.0
    %2210 = vmatpush1.msra.mxu0 0.0
    %2211 = vmatprep.subr.mxu0 0.0
    %2212 = vmatpush1.msra.mxu0 0.0
    %2213 = vmatprep.subr.mxu0 0.0
    %2214 = vmatpush1.msra.mxu0 0.0
    %2215 = vmatprep.subr.mxu0 0.0
    %2216 = vmatpush1.msra.mxu0 0.0
    %2217 = vmatprep.subr.mxu0 0.0
    %2218 = vmatpush1.msra.mxu0 0.0
    %2219 = vmatprep.subr.mxu0 0.0
    %2220 = vmatpush1.msra.mxu0 0.0
    %2221 = vmatprep.subr.mxu0 0.0
    %2222 = vmatpush1.msra.mxu0 0.0
    %2223 = vmatprep.mubr.f32.mxu0 0.0
    %2224 = vmatmul.mubr.f32.gmra.mrb[0].mxu0 %v2154
    %v2225 = vpop.f32.mrb[0].mxu0
    %v2226 = vadd.f32 %v2151, %v2225
    %v2227 = vpop.f32.mrb[0].mxu0
    %2228 = vmatprep.mubr.f32.mxu0 0.0
    %2229 = vmatmul.mubr.f32.gmra.mrb[0].mxu0 %v2157
    %v2230 = vpop.f32.mrb[0].mxu0
    %v2231 = vadd.f32 %v2151, %v2230
    %v2232 = vpop.f32.mrb[0].mxu0
    %2233 = vdwg.mxu0
    %v2234 = vadd.f32 %v2226, %v2059
    %v2235 = vadd.f32 %v2231, %v2060
    %v2236 = vsel %vm64, %v2234, 0.0
    %2237 = vadd.xlane.f32.xlu0 %v2236
    %v2238 = vpop.xlane.xlu0 %2237
    %v2239 = vsel %vm64, %v2235, 0.0
    %2240 = vadd.xlane.f32.xlu0 %v2239
    %v2241 = vpop.xlane.xlu0 %2240
    %v2242 = vmul.f32 %v2238, %v2028
    %v2243 = vmul.f32 %v2241, %v2028
    %v2244 = vsub.f32 %v2234, %v2242
    %v2245 = vsub.f32 %v2235, %v2243
    %v2246 = vmul.f32 %v2244, %v2244
    %v2247 = vmul.f32 %v2245, %v2245
    %v2248 = vsel %vm64, %v2246, 0.0
    %2249 = vadd.xlane.f32.xlu0 %v2248
    %v2250 = vpop.xlane.xlu0 %2249
    %v2251 = vsel %vm64, %v2247, 0.0
    %2252 = vadd.xlane.f32.xlu0 %v2251
    %v2253 = vpop.xlane.xlu0 %2252
    %v2254 = vmul.f32 %v2250, %v2028
    %v2255 = vmul.f32 %v2253, %v2028
    %v2256 = vadd.f32 %v2254, 1e-05
    %v2257 = vadd.f32 %v2255, 1e-05
    %v2258 = vrsqrt.pop %v2256
    %v2259 = vrsqrt.pop %v2257
    %v2260 = vmul.f32 %v2244, %v2258
    %v2261 = vmul.f32 %v2245, %v2259
    %v2262 = vlaneseq
    %v2263 = vshrl.u32 %v2262, 7
    %v2264 = vsub.s32 0, %v2263
    %v2265 = vrot.slane %v62, %v2264
    %v2266 = vmul.f32 %v2260, %v2265
    %v2267 = vmul.f32 %v2261, %v2265
    %v2268 = vlaneseq
    %v2269 = vshrl.u32 %v2268, 7
    %v2270 = vsub.s32 0, %v2269
    %v2271 = vrot.slane %v63, %v2270
    %v2272 = vadd.f32 %v2266, %v2271
    %v2273 = vadd.f32 %v2267, %v2271
    %2274 = vst.msk [vmem:[#allocation2] sm:$0xff] %vm64, %v2272
    %2275 = vst.msk [vmem:[#allocation2 + $0x8] sm:$0xff] %vm64, %v2273
    // Predicated region
    $region14: #{transformer_encoder_layer.1} parent=1 // pred_check
      _
    $region15: #{transformer_encoder_layer.1} parent=1 // pred_check_branch
      %2277 = sbr.rel (0) target = $region17
    $region16: #{transformer_encoder_layer.1} parent=1 // pred_region
      %s2279 = ssub.s32 256, 256
      %2280 = vsyncadd [#allocation3], %s2279
      %s2281 = sshll.u32 [#allocation2], 4
      %s2282 = int_to_ptr.vmem [resolvable:$true] %s2281
      %2287 = dma.vmem_to_hbm [thread:$0]  %s2282, 256, %s3, [#allocation3], 128, 128, 8
    $region17: #{transformer_encoder_layer.1} parent=1 // pred_fallthru
      _
    // Predicated region
    $region18: #{transformer_encoder_layer.1} parent=1 // pred_check
      _
    $region19: #{transformer_encoder_layer.1} parent=1 // pred_check_branch
      %2289 = sbr.rel (0) target = $region21
    $region20: #{transformer_encoder_layer.1} parent=1 // pred_region
      %2290 = dma.done [#allocation3], 256
    $region21: #{transformer_encoder_layer.1} parent=1 // pred_fallthru
      _
    %2291 = vsyncpa [#allocation3], 1

</llo_original>
